<compile_context>
chip_gen: v5e
topology: v5e:2x2
jax: 0.10.0
libtpu: 0.0.40
codegen_flags: <defaults>
</compile_context>

<pallas_src>
import functools
import math

import jax
import jax.numpy as jnp
from jax.experimental import pallas as pl
from jax.experimental.pallas import tpu as pltpu

DROP_P = 0.2

_W_NAMES = ["ln1_g", "ln1_b", "wqkv", "bqkv", "wo", "bo",
            "ln2_g", "ln2_b", "w1", "b1", "w2", "b2"]


# ----------------------------------------------------------------------------
# Fused kernel: embedding add (l==0) + L pre-LN GPT blocks, grid = (B, L)
# ----------------------------------------------------------------------------
def decoder_stack_kernel(tok_ref, pos_ref,
                         ln1g_ref, ln1b_ref, wqkv_ref, bqkv_ref, wo_ref, bo_ref,
                         ln2g_ref, ln2b_ref, w1_ref, b1_ref, w2_ref, b2_ref,
                         o_ref, x_scr, *, num_heads):
    l = pl.program_id(1)

    @pl.when(l == 0)
    def _():
        # Fused "embedding" stage: dropout(token_emb) (done in wrapper) + position_emb.
        x_scr[...] = tok_ref[0] + pos_ref[0]

    x = x_scr[...]                                      # (T, D) f32 resident state
    T, D = x.shape
    dh = D // num_heads
    scale = 1.0 / math.sqrt(dh)

    def layer_norm(h, g, b):
        mu = jnp.mean(h, axis=-1, keepdims=True)
        var = jnp.mean(jnp.square(h - mu), axis=-1, keepdims=True)
        return (h - mu) * jax.lax.rsqrt(var + 1e-5) * g + b

    # ---- causal multi-head self-attention (pre-LN) ----
    h = layer_norm(x, ln1g_ref[0], ln1b_ref[0])
    qkv = jnp.dot(h.astype(jnp.bfloat16), wqkv_ref[0],
                  preferred_element_type=jnp.float32) + bqkv_ref[0]
    q, k, v = qkv[:, :D], qkv[:, D:2 * D], qkv[:, 2 * D:]

    row = jax.lax.broadcasted_iota(jnp.int32, (T, T), 0)
    col = jax.lax.broadcasted_iota(jnp.int32, (T, T), 1)
    causal = row >= col

    heads = []
    for hd in range(num_heads):              # static loop; num_heads is small
        sl = slice(hd * dh, (hd + 1) * dh)
        qh = q[:, sl].astype(jnp.bfloat16)
        kh = k[:, sl].astype(jnp.bfloat16)
        vh = v[:, sl].astype(jnp.bfloat16)
        s = jax.lax.dot_general(qh, kh, (((1,), (1,)), ((), ())),
                                preferred_element_type=jnp.float32) * scale
        s = jnp.where(causal, s, -1e30)
        p = jnp.exp(s - jnp.max(s, axis=-1, keepdims=True))
        # EUP approximate reciprocal instead of a VPU divide.
        p = p * pl.reciprocal(jnp.sum(p, axis=-1, keepdims=True), approx=True)
        heads.append(jnp.dot(p.astype(jnp.bfloat16), vh,
                             preferred_element_type=jnp.float32))     # (T, dh) f32
    # Single full-K output projection: concat heads then (T,D)@(D,D).
    attn = jnp.concatenate(heads, axis=-1)                            # (T, D)
    x = x + jnp.dot(attn.astype(jnp.bfloat16), wo_ref[0],
                    preferred_element_type=jnp.float32) + bo_ref[0]

    # ---- MLP (pre-LN) ----
    h2 = layer_norm(x, ln2g_ref[0], ln2b_ref[0])
    m = jnp.dot(h2.astype(jnp.bfloat16), w1_ref[0],
                preferred_element_type=jnp.float32) + b1_ref[0]
    m = jax.nn.gelu(m)   # TODO(synk): tanh-approx GELU; PyTorch nn.GELU default is erf.
    x = x + jnp.dot(m.astype(jnp.bfloat16), w2_ref[0],
                    preferred_element_type=jnp.float32) + b2_ref[0]

    x_scr[...] = x

    @pl.when(l == pl.num_programs(1) - 1)
    def _():
        o_ref[0] = x_scr[...].astype(o_ref.dtype)


def decoder_stack_forward(tok_dropped, pos_table, params):
    B, T, D = tok_dropped.shape
    L = params["wqkv"].shape[0]
    H = params["num_heads"]
    weights = [params[n] for n in _W_NAMES]

    w_specs = [pl.BlockSpec((1,) + tuple(w.shape[1:]), lambda b, l: (l, 0, 0))
               for w in weights]

    # Explicit VMEM budget: double-buffered per-layer weight blocks + activations
    # + headroom for in-kernel intermediates (qkv, scores, MLP hidden).
    w_bytes = sum(2 * math.prod(w.shape[1:]) * w.dtype.itemsize for w in weights)
    act_bytes = 8 * T * D * 4 + 8 * T * 4 * D * 4
    vmem_limit = int(min(max(2 * (w_bytes + act_bytes), 16 << 20), 64 << 20))

    # Advisory cost estimate (matmul flops + exp/gelu transcendentals + HBM traffic).
    flops_layer = (2 * T * D * 3 * D) + 2 * (2 * T * T * D) + (2 * T * D * D) \
                  + (2 * T * D * 4 * D) + (2 * T * 4 * D * D)
    cost = pl.CostEstimate(
        flops=B * L * flops_layer,
        transcendentals=B * L * (T * T + T * 4 * D),
        bytes_accessed=int(sum(w.size * w.dtype.itemsize for w in weights)
                           + tok_dropped.size * 4 + pos_table.size * 4 + B * T * D * 4))

    return pl.pallas_call(
        functools.partial(decoder_stack_kernel, num_heads=H),
        out_shape=jax.ShapeDtypeStruct((B, T, D), jnp.float32),
        grid=(B, L),
        in_specs=[pl.BlockSpec((1, T, D), lambda b, l: (b, 0, 0)),   # dropped token emb
                  pl.BlockSpec((1, T, D), lambda b, l: (0, 0, 0))]   # position emb
                 + w_specs,
        out_specs=pl.BlockSpec((1, T, D), lambda b, l: (b, 0, 0)),
        scratch_shapes=[pltpu.VMEM((T, D), jnp.float32)],            # resident activation
        compiler_params=pltpu.CompilerParams(
            dimension_semantics=("parallel", "arbitrary"),
            vmem_limit_bytes=vmem_limit),
        cost_estimate=cost,
    )(tok_dropped, pos_table[None], *weights)


# ----------------------------------------------------------------------------
# Wrapper: full Decoder forward
# ----------------------------------------------------------------------------
def embed_and_dropout(X, params, *, dropout_key=None, train=True):
    tok = jnp.take(params["tok_table"], X, axis=0)       # (B, T, D) f32 gather (glue)
    if train:
        # Dropout mask drawn with jax.random (portable); XLA fuses it into the gather.
        keep = jax.random.bernoulli(dropout_key, 1.0 - DROP_P, tok.shape)
        tok = jnp.where(keep, tok * (1.0 / (1.0 - DROP_P)), 0.0)
    return tok


def decoder_forward(X, params, *, dropout_key=None, train=True):
    B, T = X.shape
    context_len, D = params["pos_table"].shape
    # Reference adds embeddings for the FULL context_len positions -> requires
    # T == context_len; we honor that convention.
    assert T == context_len, (T, context_len)
    tok = embed_and_dropout(X, params, dropout_key=dropout_key, train=train)
    return decoder_stack_forward(tok, params["pos_table"], params)


# ----------------------------------------------------------------------------
# Pure-JAX reference (mirrors the kernel math, incl. bf16 matmul operands)
# ----------------------------------------------------------------------------
def decoder_ref(tok_dropped, pos_table, params):
    H = params["num_heads"]
    L = params["wqkv"].shape[0]
    x = tok_dropped + pos_table[None]
    B, T, D = x.shape
    dh = D // H
    scale = 1.0 / math.sqrt(dh)
    causal = jnp.tril(jnp.ones((T, T), dtype=bool))

    def ln(h, g, b):
        mu = jnp.mean(h, axis=-1, keepdims=True)
        var = jnp.mean(jnp.square(h - mu), axis=-1, keepdims=True)
        return (h - mu) * jax.lax.rsqrt(var + 1e-5) * g + b

    for l in range(L):
        h = ln(x, params["ln1_g"][l, 0], params["ln1_b"][l, 0])
        qkv = jnp.einsum("btd,de->bte", h.astype(jnp.bfloat16), params["wqkv"][l],
                         preferred_element_type=jnp.float32) + params["bqkv"][l, 0]
        q, k, v = jnp.split(qkv, 3, axis=-1)
        q = q.reshape(B, T, H, dh).astype(jnp.bfloat16)
        k = k.reshape(B, T, H, dh).astype(jnp.bfloat16)
        v = v.reshape(B, T, H, dh).astype(jnp.bfloat16)
        s = jnp.einsum("bqhd,bkhd->bhqk", q, k,
                       preferred_element_type=jnp.float32) * scale
        s = jnp.where(causal, s, -1e30)
        p = jax.nn.softmax(s, axis=-1)
        attn = jnp.einsum("bhqk,bkhd->bqhd", p.astype(jnp.bfloat16), v,
                          preferred_element_type=jnp.float32).reshape(B, T, D)
        x = x + jnp.einsum("btd,de->bte", attn.astype(jnp.bfloat16), params["wo"][l],
                           preferred_element_type=jnp.float32) + params["bo"][l, 0]
        h2 = ln(x, params["ln2_g"][l, 0], params["ln2_b"][l, 0])
        m = jax.nn.gelu(jnp.einsum("btd,de->bte", h2.astype(jnp.bfloat16),
                                   params["w1"][l],
                                   preferred_element_type=jnp.float32)
                        + params["b1"][l, 0])
        x = x + jnp.einsum("bte,ed->btd", m.astype(jnp.bfloat16), params["w2"][l],
                           preferred_element_type=jnp.float32) + params["b2"][l, 0]
    return x


def init_params(key, *, vocab_len, context_len, embedding_dim, num_layers, num_heads):
    D, L = embedding_dim, num_layers
    k_tok, k_pos, k1, k2, k3, k4 = jax.random.split(key, 6)
    wdt = jnp.bfloat16                                   # MXU-native weight storage
    return {
        # nn.init.normal_(std=0.02) on token embedding
        "tok_table": 0.02 * jax.random.normal(k_tok, (vocab_len, D), jnp.float32),
        # nn.Embedding default init: N(0, 1)
        "pos_table": jax.random.normal(k_pos, (context_len, D), jnp.float32),
        "num_heads": num_heads,
        # per-layer weights stacked along a leading L axis
        "ln1_g": jnp.ones((L, 1, D), jnp.float32),
        "ln1_b": jnp.zeros((L, 1, D), jnp.float32),
        "wqkv": (0.02 * jax.random.normal(k1, (L, D, 3 * D), jnp.float32)).astype(wdt),
        "bqkv": jnp.zeros((L, 1, 3 * D), jnp.float32),
        "wo": (0.02 * jax.random.normal(k2, (L, D, D), jnp.float32)).astype(wdt),
        "bo": jnp.zeros((L, 1, D), jnp.float32),
        "ln2_g": jnp.ones((L, 1, D), jnp.float32),
        "ln2_b": jnp.zeros((L, 1, D), jnp.float32),
        "w1": (0.02 * jax.random.normal(k3, (L, D, 4 * D), jnp.float32)).astype(wdt),
        "b1": jnp.zeros((L, 1, 4 * D), jnp.float32),
        "w2": (0.02 * jax.random.normal(k4, (L, 4 * D, D), jnp.float32)).astype(wdt),
        "b2": jnp.zeros((L, 1, D), jnp.float32),
    }


if __name__ == "__main__":
    config = dict(vocab_len=64, context_len=8, embedding_dim=32,
                  num_layers=2, num_heads=4)
    key = jax.random.PRNGKey(0)
    k_param, k_data, k_drop = jax.random.split(key, 3)
    params = init_params(k_param, **config)

    B, T = 2, config["context_len"]
    X = jax.random.randint(k_data, (B, T), 0, config["vocab_len"], dtype=jnp.int32)

    # Embedding + dropout (same tensor feeds both the kernel and the reference).
    tok = embed_and_dropout(X, params, dropout_key=k_drop, train=True)

    out = decoder_stack_forward(tok, params["pos_table"], params)
    out = jax.block_until_ready(out)
    assert out.shape == (B, T, config["embedding_dim"]), out.shape
    assert bool(jnp.all(jnp.isfinite(out)))

    # Correctness check against a pure-JAX reference of the same math.
    ref = decoder_ref(tok, params["pos_table"], params)
    err = float(jnp.max(jnp.abs(out - ref)))
    assert err < 5e-2, f"max abs err vs reference: {err}"

    print("KERNEL_OK")
</pallas_src>

<mosaic_0001>
module attributes {stable_mosaic.version = 11 : i64} {
  func.func @decoder_stack_kernel(%arg0: i32, %arg1: i32, %arg2: memref<1x8x32xf32, #tpu.memory_space<vmem>>, %arg3: memref<1x8x32xf32, #tpu.memory_space<vmem>>, %arg4: memref<1x1x32xf32, #tpu.memory_space<vmem>>, %arg5: memref<1x1x32xf32, #tpu.memory_space<vmem>>, %arg6: memref<1x32x96xbf16, #tpu.memory_space<vmem>>, %arg7: memref<1x1x96xf32, #tpu.memory_space<vmem>>, %arg8: memref<1x32x32xbf16, #tpu.memory_space<vmem>>, %arg9: memref<1x1x32xf32, #tpu.memory_space<vmem>>, %arg10: memref<1x1x32xf32, #tpu.memory_space<vmem>>, %arg11: memref<1x1x32xf32, #tpu.memory_space<vmem>>, %arg12: memref<1x32x128xbf16, #tpu.memory_space<vmem>>, %arg13: memref<1x1x128xf32, #tpu.memory_space<vmem>>, %arg14: memref<1x128x32xbf16, #tpu.memory_space<vmem>>, %arg15: memref<1x1x32xf32, #tpu.memory_space<vmem>>, %arg16: memref<1x8x32xf32, #tpu.memory_space<vmem>>, %arg17: memref<8x32xf32, #tpu.memory_space<vmem>>) attributes {dimension_semantics = [#tpu.dimension_semantics<parallel>, #tpu.dimension_semantics<arbitrary>], iteration_bounds = array<i64: 2, 2>, scalar_prefetch = 0 : i64, scratch_operands = 1 : i64, tpu.core_type = #tpu.core_type<tc>, window_params = [{transform_indices = @transform_0, window_bounds = array<i64: 1, 8, 32>}, {pipeline_mode = #tpu.pipeline_mode<synchronous>, transform_indices = @transform_1, window_bounds = array<i64: 1, 8, 32>}, {transform_indices = @transform_2, window_bounds = array<i64: 1, 1, 32>}, {transform_indices = @transform_3, window_bounds = array<i64: 1, 1, 32>}, {transform_indices = @transform_4, window_bounds = array<i64: 1, 32, 96>}, {transform_indices = @transform_5, window_bounds = array<i64: 1, 1, 96>}, {transform_indices = @transform_6, window_bounds = array<i64: 1, 32, 32>}, {transform_indices = @transform_7, window_bounds = array<i64: 1, 1, 32>}, {transform_indices = @transform_8, window_bounds = array<i64: 1, 1, 32>}, {transform_indices = @transform_9, window_bounds = array<i64: 1, 1, 32>}, {transform_indices = @transform_10, window_bounds = array<i64: 1, 32, 128>}, {transform_indices = @transform_11, window_bounds = array<i64: 1, 1, 128>}, {transform_indices = @transform_12, window_bounds = array<i64: 1, 128, 32>}, {transform_indices = @transform_13, window_bounds = array<i64: 1, 1, 32>}, {transform_indices = @transform_14, window_bounds = array<i64: 1, 8, 32>}]} {
    %c0_i32 = arith.constant 0 : i32
    %0 = arith.cmpi eq, %arg1, %c0_i32 : i32
    %1 = arith.extui %0 : i1 to i32
    %c0_i32_0 = arith.constant 0 : i32
    %2 = arith.cmpi ne, %1, %c0_i32_0 : i32
    scf.if %2 {
      %c0_82 = arith.constant 0 : index
      %c0_83 = arith.constant 0 : index
      %c0_84 = arith.constant 0 : index
      %206 = vector.load %arg2[%c0_82, %c0_83, %c0_84] : memref<1x8x32xf32, #tpu.memory_space<vmem>>, vector<1x8x32xf32>
      %207 = vector.shape_cast %206 : vector<1x8x32xf32> to vector<8x32xf32>
      %c0_85 = arith.constant 0 : index
      %c0_86 = arith.constant 0 : index
      %c0_87 = arith.constant 0 : index
      %208 = vector.load %arg3[%c0_85, %c0_86, %c0_87] : memref<1x8x32xf32, #tpu.memory_space<vmem>>, vector<1x8x32xf32>
      %209 = vector.shape_cast %208 : vector<1x8x32xf32> to vector<8x32xf32>
      %210 = arith.addf %207, %209 : vector<8x32xf32>
      %c0_88 = arith.constant 0 : index
      %c0_89 = arith.constant 0 : index
      %211 = vector.load %arg17[%c0_88, %c0_89] : memref<8x32xf32, #tpu.memory_space<vmem>>, vector<8x32xf32>
      tpu.vector_store %arg17[%c0_88, %c0_89], %210 {strides = array<i32>} : memref<8x32xf32, #tpu.memory_space<vmem>>, vector<8x32xf32>,
    } else {
    }
    %c0 = arith.constant 0 : index
    %c0_1 = arith.constant 0 : index
    %3 = vector.load %arg17[%c0, %c0_1] : memref<8x32xf32, #tpu.memory_space<vmem>>, vector<8x32xf32>
    %c0_2 = arith.constant 0 : index
    %c0_3 = arith.constant 0 : index
    %c0_4 = arith.constant 0 : index
    %4 = vector.load %arg4[%c0_2, %c0_3, %c0_4] : memref<1x1x32xf32, #tpu.memory_space<vmem>>, vector<1x1x32xf32>
    %5 = vector.shape_cast %4 : vector<1x1x32xf32> to vector<1x32xf32>
    %c0_5 = arith.constant 0 : index
    %c0_6 = arith.constant 0 : index
    %c0_7 = arith.constant 0 : index
    %6 = vector.load %arg5[%c0_5, %c0_6, %c0_7] : memref<1x1x32xf32, #tpu.memory_space<vmem>>, vector<1x1x32xf32>
    %7 = vector.shape_cast %6 : vector<1x1x32xf32> to vector<1x32xf32>
    %cst = arith.constant dense<0.000000e+00> : vector<8xf32>
    %8 = vector.multi_reduction <add>, %3, %cst [1] : vector<8x32xf32> to vector<8xf32>
    %9 = vector.shape_cast %8 : vector<8xf32> to vector<8x1xf32>
    %cst_8 = arith.constant 3.200000e+01 : f32
    %10 = vector.broadcast %cst_8 : f32 to vector<8x1xf32>
    %11 = arith.divf %9, %10 : vector<8x1xf32>
    %12 = vector.broadcast %11 : vector<8x1xf32> to vector<8x32xf32>
    %13 = arith.subf %3, %12 : vector<8x32xf32>
    %14 = arith.mulf %13, %13 : vector<8x32xf32>
    %cst_9 = arith.constant dense<0.000000e+00> : vector<8xf32>
    %15 = vector.multi_reduction <add>, %14, %cst_9 [1] : vector<8x32xf32> to vector<8xf32>
    %16 = vector.shape_cast %15 : vector<8xf32> to vector<8x1xf32>
    %cst_10 = arith.constant 3.200000e+01 : f32
    %17 = vector.broadcast %cst_10 : f32 to vector<8x1xf32>
    %18 = arith.divf %16, %17 : vector<8x1xf32>
    %19 = vector.broadcast %11 : vector<8x1xf32> to vector<8x32xf32>
    %20 = arith.subf %3, %19 : vector<8x32xf32>
    %cst_11 = arith.constant 9.99999974E-6 : f32
    %21 = vector.broadcast %cst_11 : f32 to vector<8x1xf32>
    %22 = arith.addf %18, %21 : vector<8x1xf32>
    %23 = math.rsqrt %22 : vector<8x1xf32>
    %24 = vector.broadcast %23 : vector<8x1xf32> to vector<8x32xf32>
    %25 = arith.mulf %20, %24 : vector<8x32xf32>
    %26 = vector.broadcast %5 : vector<1x32xf32> to vector<8x32xf32>
    %27 = arith.mulf %25, %26 : vector<8x32xf32>
    %28 = vector.broadcast %7 : vector<1x32xf32> to vector<8x32xf32>
    %29 = arith.addf %27, %28 : vector<8x32xf32>
    %30 = arith.truncf %29 : vector<8x32xf32> to vector<8x32xbf16>
    %c0_12 = arith.constant 0 : index
    %c0_13 = arith.constant 0 : index
    %c0_14 = arith.constant 0 : index
    %31 = vector.load %arg6[%c0_12, %c0_13, %c0_14] : memref<1x32x96xbf16, #tpu.memory_space<vmem>>, vector<1x32x96xbf16>
    %32 = vector.shape_cast %31 : vector<1x32x96xbf16> to vector<32x96xbf16>
    %cst_15 = arith.constant dense<0.000000e+00> : vector<8x96xf32>
    %33 = tpu.matmul %30, %32, %cst_15 {dimension_numbers = #tpu.dot_dimension_numbers<[1], [0], [0], [1], [0, 0, 1, 1], [], []>} : vector<8x32xbf16>, vector<32x96xbf16>, vector<8x96xf32> -> vector<8x96xf32>
    %c0_16 = arith.constant 0 : index
    %c0_17 = arith.constant 0 : index
    %c0_18 = arith.constant 0 : index
    %34 = vector.load %arg7[%c0_16, %c0_17, %c0_18] : memref<1x1x96xf32, #tpu.memory_space<vmem>>, vector<1x1x96xf32>
    %35 = vector.shape_cast %34 : vector<1x1x96xf32> to vector<1x96xf32>
    %36 = vector.broadcast %35 : vector<1x96xf32> to vector<8x96xf32>
    %37 = arith.addf %33, %36 : vector<8x96xf32>
    %38 = vector.extract_strided_slice %37 {offsets = [0, 0], sizes = [8, 32], strides = [1, 1]} : vector<8x96xf32> to vector<8x32xf32>
    %39 = vector.extract_strided_slice %37 {offsets = [0, 32], sizes = [8, 32], strides = [1, 1]} : vector<8x96xf32> to vector<8x32xf32>
    %40 = vector.extract_strided_slice %37 {offsets = [0, 64], sizes = [8, 32], strides = [1, 1]} : vector<8x96xf32> to vector<8x32xf32>
    %41 = tpu.iota {dimensions = array<i32: 0>} : vector<8x8xi32>
    %42 = tpu.iota {dimensions = array<i32: 1>} : vector<8x8xi32>
    %43 = arith.cmpi sge, %41, %42 : vector<8x8xi32>
    %44 = vector.extract_strided_slice %38 {offsets = [0, 0], sizes = [8, 8], strides = [1, 1]} : vector<8x32xf32> to vector<8x8xf32>
    %45 = arith.truncf %44 : vector<8x8xf32> to vector<8x8xbf16>
    %46 = vector.extract_strided_slice %39 {offsets = [0, 0], sizes = [8, 8], strides = [1, 1]} : vector<8x32xf32> to vector<8x8xf32>
    %47 = arith.truncf %46 : vector<8x8xf32> to vector<8x8xbf16>
    %48 = vector.extract_strided_slice %40 {offsets = [0, 0], sizes = [8, 8], strides = [1, 1]} : vector<8x32xf32> to vector<8x8xf32>
    %49 = arith.truncf %48 : vector<8x8xf32> to vector<8x8xbf16>
    %cst_19 = arith.constant dense<0.000000e+00> : vector<8x8xf32>
    %50 = tpu.matmul %45, %47, %cst_19 {dimension_numbers = #tpu.dot_dimension_numbers<[1], [1], [0], [0], [0, 0, 1, 0], [], []>} : vector<8x8xbf16>, vector<8x8xbf16>, vector<8x8xf32> -> vector<8x8xf32>
    %cst_20 = arith.constant 0.353553385 : f32
    %51 = vector.broadcast %cst_20 : f32 to vector<8x8xf32>
    %52 = arith.mulf %50, %51 : vector<8x8xf32>
    %cst_21 = arith.constant -1.000000e+30 : f32
    %53 = vector.broadcast %cst_21 : f32 to vector<8x8xf32>
    %54 = arith.select %43, %52, %53 : vector<8x8xi1>, vector<8x8xf32>
    %cst_22 = arith.constant dense<0xFF800000> : vector<8xf32>
    %55 = vector.multi_reduction <maximumf>, %54, %cst_22 [1] : vector<8x8xf32> to vector<8xf32>
    %56 = vector.shape_cast %55 : vector<8xf32> to vector<8x1xf32>
    %57 = vector.broadcast %56 : vector<8x1xf32> to vector<8x8xf32>
    %58 = arith.subf %54, %57 : vector<8x8xf32>
    %59 = math.exp %58 : vector<8x8xf32>
    %cst_23 = arith.constant dense<0.000000e+00> : vector<8xf32>
    %60 = vector.multi_reduction <add>, %59, %cst_23 [1] : vector<8x8xf32> to vector<8xf32>
    %61 = vector.shape_cast %60 : vector<8xf32> to vector<8x1xf32>
    %62 = tpu.reciprocal %61 {approx = true} : vector<8x1xf32> -> vector<8x1xf32>
    %63 = vector.broadcast %62 : vector<8x1xf32> to vector<8x8xf32>
    %64 = arith.mulf %59, %63 : vector<8x8xf32>
    %65 = arith.truncf %64 : vector<8x8xf32> to vector<8x8xbf16>
    %cst_24 = arith.constant dense<0.000000e+00> : vector<8x8xf32>
    %66 = tpu.matmul %65, %49, %cst_24 {dimension_numbers = #tpu.dot_dimension_numbers<[1], [0], [0], [1], [0, 0, 1, 1], [], []>} : vector<8x8xbf16>, vector<8x8xbf16>, vector<8x8xf32> -> vector<8x8xf32>
    %67 = vector.extract_strided_slice %38 {offsets = [0, 8], sizes = [8, 8], strides = [1, 1]} : vector<8x32xf32> to vector<8x8xf32>
    %68 = arith.truncf %67 : vector<8x8xf32> to vector<8x8xbf16>
    %69 = vector.extract_strided_slice %39 {offsets = [0, 8], sizes = [8, 8], strides = [1, 1]} : vector<8x32xf32> to vector<8x8xf32>
    %70 = arith.truncf %69 : vector<8x8xf32> to vector<8x8xbf16>
    %71 = vector.extract_strided_slice %40 {offsets = [0, 8], sizes = [8, 8], strides = [1, 1]} : vector<8x32xf32> to vector<8x8xf32>
    %72 = arith.truncf %71 : vector<8x8xf32> to vector<8x8xbf16>
    %cst_25 = arith.constant dense<0.000000e+00> : vector<8x8xf32>
    %73 = tpu.matmul %68, %70, %cst_25 {dimension_numbers = #tpu.dot_dimension_numbers<[1], [1], [0], [0], [0, 0, 1, 0], [], []>} : vector<8x8xbf16>, vector<8x8xbf16>, vector<8x8xf32> -> vector<8x8xf32>
    %cst_26 = arith.constant 0.353553385 : f32
    %74 = vector.broadcast %cst_26 : f32 to vector<8x8xf32>
    %75 = arith.mulf %73, %74 : vector<8x8xf32>
    %cst_27 = arith.constant -1.000000e+30 : f32
    %76 = vector.broadcast %cst_27 : f32 to vector<8x8xf32>
    %77 = arith.select %43, %75, %76 : vector<8x8xi1>, vector<8x8xf32>
    %cst_28 = arith.constant dense<0xFF800000> : vector<8xf32>
    %78 = vector.multi_reduction <maximumf>, %77, %cst_28 [1] : vector<8x8xf32> to vector<8xf32>
    %79 = vector.shape_cast %78 : vector<8xf32> to vector<8x1xf32>
    %80 = vector.broadcast %79 : vector<8x1xf32> to vector<8x8xf32>
    %81 = arith.subf %77, %80 : vector<8x8xf32>
    %82 = math.exp %81 : vector<8x8xf32>
    %cst_29 = arith.constant dense<0.000000e+00> : vector<8xf32>
    %83 = vector.multi_reduction <add>, %82, %cst_29 [1] : vector<8x8xf32> to vector<8xf32>
    %84 = vector.shape_cast %83 : vector<8xf32> to vector<8x1xf32>
    %85 = tpu.reciprocal %84 {approx = true} : vector<8x1xf32> -> vector<8x1xf32>
    %86 = vector.broadcast %85 : vector<8x1xf32> to vector<8x8xf32>
    %87 = arith.mulf %82, %86 : vector<8x8xf32>
    %88 = arith.truncf %87 : vector<8x8xf32> to vector<8x8xbf16>
    %cst_30 = arith.constant dense<0.000000e+00> : vector<8x8xf32>
    %89 = tpu.matmul %88, %72, %cst_30 {dimension_numbers = #tpu.dot_dimension_numbers<[1], [0], [0], [1], [0, 0, 1, 1], [], []>} : vector<8x8xbf16>, vector<8x8xbf16>, vector<8x8xf32> -> vector<8x8xf32>
    %90 = vector.extract_strided_slice %38 {offsets = [0, 16], sizes = [8, 8], strides = [1, 1]} : vector<8x32xf32> to vector<8x8xf32>
    %91 = arith.truncf %90 : vector<8x8xf32> to vector<8x8xbf16>
    %92 = vector.extract_strided_slice %39 {offsets = [0, 16], sizes = [8, 8], strides = [1, 1]} : vector<8x32xf32> to vector<8x8xf32>
    %93 = arith.truncf %92 : vector<8x8xf32> to vector<8x8xbf16>
    %94 = vector.extract_strided_slice %40 {offsets = [0, 16], sizes = [8, 8], strides = [1, 1]} : vector<8x32xf32> to vector<8x8xf32>
    %95 = arith.truncf %94 : vector<8x8xf32> to vector<8x8xbf16>
    %cst_31 = arith.constant dense<0.000000e+00> : vector<8x8xf32>
    %96 = tpu.matmul %91, %93, %cst_31 {dimension_numbers = #tpu.dot_dimension_numbers<[1], [1], [0], [0], [0, 0, 1, 0], [], []>} : vector<8x8xbf16>, vector<8x8xbf16>, vector<8x8xf32> -> vector<8x8xf32>
    %cst_32 = arith.constant 0.353553385 : f32
    %97 = vector.broadcast %cst_32 : f32 to vector<8x8xf32>
    %98 = arith.mulf %96, %97 : vector<8x8xf32>
    %cst_33 = arith.constant -1.000000e+30 : f32
    %99 = vector.broadcast %cst_33 : f32 to vector<8x8xf32>
    %100 = arith.select %43, %98, %99 : vector<8x8xi1>, vector<8x8xf32>
    %cst_34 = arith.constant dense<0xFF800000> : vector<8xf32>
    %101 = vector.multi_reduction <maximumf>, %100, %cst_34 [1] : vector<8x8xf32> to vector<8xf32>
    %102 = vector.shape_cast %101 : vector<8xf32> to vector<8x1xf32>
    %103 = vector.broadcast %102 : vector<8x1xf32> to vector<8x8xf32>
    %104 = arith.subf %100, %103 : vector<8x8xf32>
    %105 = math.exp %104 : vector<8x8xf32>
    %cst_35 = arith.constant dense<0.000000e+00> : vector<8xf32>
    %106 = vector.multi_reduction <add>, %105, %cst_35 [1] : vector<8x8xf32> to vector<8xf32>
    %107 = vector.shape_cast %106 : vector<8xf32> to vector<8x1xf32>
    %108 = tpu.reciprocal %107 {approx = true} : vector<8x1xf32> -> vector<8x1xf32>
    %109 = vector.broadcast %108 : vector<8x1xf32> to vector<8x8xf32>
    %110 = arith.mulf %105, %109 : vector<8x8xf32>
    %111 = arith.truncf %110 : vector<8x8xf32> to vector<8x8xbf16>
    %cst_36 = arith.constant dense<0.000000e+00> : vector<8x8xf32>
    %112 = tpu.matmul %111, %95, %cst_36 {dimension_numbers = #tpu.dot_dimension_numbers<[1], [0], [0], [1], [0, 0, 1, 1], [], []>} : vector<8x8xbf16>, vector<8x8xbf16>, vector<8x8xf32> -> vector<8x8xf32>
    %113 = vector.extract_strided_slice %38 {offsets = [0, 24], sizes = [8, 8], strides = [1, 1]} : vector<8x32xf32> to vector<8x8xf32>
    %114 = arith.truncf %113 : vector<8x8xf32> to vector<8x8xbf16>
    %115 = vector.extract_strided_slice %39 {offsets = [0, 24], sizes = [8, 8], strides = [1, 1]} : vector<8x32xf32> to vector<8x8xf32>
    %116 = arith.truncf %115 : vector<8x8xf32> to vector<8x8xbf16>
    %117 = vector.extract_strided_slice %40 {offsets = [0, 24], sizes = [8, 8], strides = [1, 1]} : vector<8x32xf32> to vector<8x8xf32>
    %118 = arith.truncf %117 : vector<8x8xf32> to vector<8x8xbf16>
    %cst_37 = arith.constant dense<0.000000e+00> : vector<8x8xf32>
    %119 = tpu.matmul %114, %116, %cst_37 {dimension_numbers = #tpu.dot_dimension_numbers<[1], [1], [0], [0], [0, 0, 1, 0], [], []>} : vector<8x8xbf16>, vector<8x8xbf16>, vector<8x8xf32> -> vector<8x8xf32>
    %cst_38 = arith.constant 0.353553385 : f32
    %120 = vector.broadcast %cst_38 : f32 to vector<8x8xf32>
    %121 = arith.mulf %119, %120 : vector<8x8xf32>
    %cst_39 = arith.constant -1.000000e+30 : f32
    %122 = vector.broadcast %cst_39 : f32 to vector<8x8xf32>
    %123 = arith.select %43, %121, %122 : vector<8x8xi1>, vector<8x8xf32>
    %cst_40 = arith.constant dense<0xFF800000> : vector<8xf32>
    %124 = vector.multi_reduction <maximumf>, %123, %cst_40 [1] : vector<8x8xf32> to vector<8xf32>
    %125 = vector.shape_cast %124 : vector<8xf32> to vector<8x1xf32>
    %126 = vector.broadcast %125 : vector<8x1xf32> to vector<8x8xf32>
    %127 = arith.subf %123, %126 : vector<8x8xf32>
    %128 = math.exp %127 : vector<8x8xf32>
    %cst_41 = arith.constant dense<0.000000e+00> : vector<8xf32>
    %129 = vector.multi_reduction <add>, %128, %cst_41 [1] : vector<8x8xf32> to vector<8xf32>
    %130 = vector.shape_cast %129 : vector<8xf32> to vector<8x1xf32>
    %131 = tpu.reciprocal %130 {approx = true} : vector<8x1xf32> -> vector<8x1xf32>
    %132 = vector.broadcast %131 : vector<8x1xf32> to vector<8x8xf32>
    %133 = arith.mulf %128, %132 : vector<8x8xf32>
    %134 = arith.truncf %133 : vector<8x8xf32> to vector<8x8xbf16>
    %cst_42 = arith.constant dense<0.000000e+00> : vector<8x8xf32>
    %135 = tpu.matmul %134, %118, %cst_42 {dimension_numbers = #tpu.dot_dimension_numbers<[1], [0], [0], [1], [0, 0, 1, 1], [], []>} : vector<8x8xbf16>, vector<8x8xbf16>, vector<8x8xf32> -> vector<8x8xf32>
    %136 = tpu.concatenate %66, %89, %112, %135 in 1 : vector<8x8xf32>, vector<8x8xf32>, vector<8x8xf32>, vector<8x8xf32> -> vector<8x32xf32>
    %137 = arith.truncf %136 : vector<8x32xf32> to vector<8x32xbf16>
    %c0_43 = arith.constant 0 : index
    %c0_44 = arith.constant 0 : index
    %c0_45 = arith.constant 0 : index
    %138 = vector.load %arg8[%c0_43, %c0_44, %c0_45] : memref<1x32x32xbf16, #tpu.memory_space<vmem>>, vector<1x32x32xbf16>
    %139 = vector.shape_cast %138 : vector<1x32x32xbf16> to vector<32x32xbf16>
    %cst_46 = arith.constant dense<0.000000e+00> : vector<8x32xf32>
    %140 = tpu.matmul %137, %139, %cst_46 {dimension_numbers = #tpu.dot_dimension_numbers<[1], [0], [0], [1], [0, 0, 1, 1], [], []>} : vector<8x32xbf16>, vector<32x32xbf16>, vector<8x32xf32> -> vector<8x32xf32>
    %141 = arith.addf %3, %140 : vector<8x32xf32>
    %c0_47 = arith.constant 0 : index
    %c0_48 = arith.constant 0 : index
    %c0_49 = arith.constant 0 : index
    %142 = vector.load %arg9[%c0_47, %c0_48, %c0_49] : memref<1x1x32xf32, #tpu.memory_space<vmem>>, vector<1x1x32xf32>
    %143 = vector.shape_cast %142 : vector<1x1x32xf32> to vector<1x32xf32>
    %144 = vector.broadcast %143 : vector<1x32xf32> to vector<8x32xf32>
    %145 = arith.addf %141, %144 : vector<8x32xf32>
    %c0_50 = arith.constant 0 : index
    %c0_51 = arith.constant 0 : index
    %c0_52 = arith.constant 0 : index
    %146 = vector.load %arg10[%c0_50, %c0_51, %c0_52] : memref<1x1x32xf32, #tpu.memory_space<vmem>>, vector<1x1x32xf32>
    %147 = vector.shape_cast %146 : vector<1x1x32xf32> to vector<1x32xf32>
    %c0_53 = arith.constant 0 : index
    %c0_54 = arith.constant 0 : index
    %c0_55 = arith.constant 0 : index
    %148 = vector.load %arg11[%c0_53, %c0_54, %c0_55] : memref<1x1x32xf32, #tpu.memory_space<vmem>>, vector<1x1x32xf32>
    %149 = vector.shape_cast %148 : vector<1x1x32xf32> to vector<1x32xf32>
    %cst_56 = arith.constant dense<0.000000e+00> : vector<8xf32>
    %150 = vector.multi_reduction <add>, %145, %cst_56 [1] : vector<8x32xf32> to vector<8xf32>
    %151 = vector.shape_cast %150 : vector<8xf32> to vector<8x1xf32>
    %cst_57 = arith.constant 3.200000e+01 : f32
    %152 = vector.broadcast %cst_57 : f32 to vector<8x1xf32>
    %153 = arith.divf %151, %152 : vector<8x1xf32>
    %154 = vector.broadcast %153 : vector<8x1xf32> to vector<8x32xf32>
    %155 = arith.subf %145, %154 : vector<8x32xf32>
    %156 = arith.mulf %155, %155 : vector<8x32xf32>
    %cst_58 = arith.constant dense<0.000000e+00> : vector<8xf32>
    %157 = vector.multi_reduction <add>, %156, %cst_58 [1] : vector<8x32xf32> to vector<8xf32>
    %158 = vector.shape_cast %157 : vector<8xf32> to vector<8x1xf32>
    %cst_59 = arith.constant 3.200000e+01 : f32
    %159 = vector.broadcast %cst_59 : f32 to vector<8x1xf32>
    %160 = arith.divf %158, %159 : vector<8x1xf32>
    %161 = vector.broadcast %153 : vector<8x1xf32> to vector<8x32xf32>
    %162 = arith.subf %145, %161 : vector<8x32xf32>
    %cst_60 = arith.constant 9.99999974E-6 : f32
    %163 = vector.broadcast %cst_60 : f32 to vector<8x1xf32>
    %164 = arith.addf %160, %163 : vector<8x1xf32>
    %165 = math.rsqrt %164 : vector<8x1xf32>
    %166 = vector.broadcast %165 : vector<8x1xf32> to vector<8x32xf32>
    %167 = arith.mulf %162, %166 : vector<8x32xf32>
    %168 = vector.broadcast %147 : vector<1x32xf32> to vector<8x32xf32>
    %169 = arith.mulf %167, %168 : vector<8x32xf32>
    %170 = vector.broadcast %149 : vector<1x32xf32> to vector<8x32xf32>
    %171 = arith.addf %169, %170 : vector<8x32xf32>
    %172 = arith.truncf %171 : vector<8x32xf32> to vector<8x32xbf16>
    %c0_61 = arith.constant 0 : index
    %c0_62 = arith.constant 0 : index
    %c0_63 = arith.constant 0 : index
    %173 = vector.load %arg12[%c0_61, %c0_62, %c0_63] : memref<1x32x128xbf16, #tpu.memory_space<vmem>>, vector<1x32x128xbf16>
    %174 = vector.shape_cast %173 : vector<1x32x128xbf16> to vector<32x128xbf16>
    %cst_64 = arith.constant dense<0.000000e+00> : vector<8x128xf32>
    %175 = tpu.matmul %172, %174, %cst_64 {dimension_numbers = #tpu.dot_dimension_numbers<[1], [0], [0], [1], [0, 0, 1, 1], [], []>} : vector<8x32xbf16>, vector<32x128xbf16>, vector<8x128xf32> -> vector<8x128xf32>
    %c0_65 = arith.constant 0 : index
    %c0_66 = arith.constant 0 : index
    %c0_67 = arith.constant 0 : index
    %176 = vector.load %arg13[%c0_65, %c0_66, %c0_67] : memref<1x1x128xf32, #tpu.memory_space<vmem>>, vector<1x1x128xf32>
    %177 = vector.shape_cast %176 : vector<1x1x128xf32> to vector<1x128xf32>
    %178 = vector.broadcast %177 : vector<1x128xf32> to vector<8x128xf32>
    %179 = arith.addf %175, %178 : vector<8x128xf32>
    %180 = arith.mulf %179, %179 : vector<8x128xf32>
    %181 = arith.mulf %179, %180 : vector<8x128xf32>
    %cst_68 = arith.constant 4.471500e-02 : f32
    %182 = vector.broadcast %cst_68 : f32 to vector<8x128xf32>
    %183 = arith.mulf %182, %181 : vector<8x128xf32>
    %184 = arith.addf %179, %183 : vector<8x128xf32>
    %cst_69 = arith.constant 0.797884583 : f32
    %185 = vector.broadcast %cst_69 : f32 to vector<8x128xf32>
    %186 = arith.mulf %185, %184 : vector<8x128xf32>
    %187 = math.tanh %186 : vector<8x128xf32>
    %cst_70 = arith.constant 1.000000e+00 : f32
    %188 = vector.broadcast %cst_70 : f32 to vector<8x128xf32>
    %189 = arith.addf %188, %187 : vector<8x128xf32>
    %cst_71 = arith.constant 5.000000e-01 : f32
    %190 = vector.broadcast %cst_71 : f32 to vector<8x128xf32>
    %191 = arith.mulf %190, %189 : vector<8x128xf32>
    %192 = arith.mulf %179, %191 : vector<8x128xf32>
    %193 = arith.truncf %192 : vector<8x128xf32> to vector<8x128xbf16>
    %c0_72 = arith.constant 0 : index
    %c0_73 = arith.constant 0 : index
    %c0_74 = arith.constant 0 : index
    %194 = vector.load %arg14[%c0_72, %c0_73, %c0_74] : memref<1x128x32xbf16, #tpu.memory_space<vmem>>, vector<1x128x32xbf16>
    %195 = vector.shape_cast %194 : vector<1x128x32xbf16> to vector<128x32xbf16>
    %cst_75 = arith.constant dense<0.000000e+00> : vector<8x32xf32>
    %196 = tpu.matmul %193, %195, %cst_75 {dimension_numbers = #tpu.dot_dimension_numbers<[1], [0], [0], [1], [0, 0, 1, 1], [], []>} : vector<8x128xbf16>, vector<128x32xbf16>, vector<8x32xf32> -> vector<8x32xf32>
    %197 = arith.addf %145, %196 : vector<8x32xf32>
    %c0_76 = arith.constant 0 : index
    %c0_77 = arith.constant 0 : index
    %c0_78 = arith.constant 0 : index
    %198 = vector.load %arg15[%c0_76, %c0_77, %c0_78] : memref<1x1x32xf32, #tpu.memory_space<vmem>>, vector<1x1x32xf32>
    %199 = vector.shape_cast %198 : vector<1x1x32xf32> to vector<1x32xf32>
    %200 = vector.broadcast %199 : vector<1x32xf32> to vector<8x32xf32>
    %201 = arith.addf %197, %200 : vector<8x32xf32>
    %c0_79 = arith.constant 0 : index
    %c0_80 = arith.constant 0 : index
    %202 = vector.load %arg17[%c0_79, %c0_80] : memref<8x32xf32, #tpu.memory_space<vmem>>, vector<8x32xf32>
    tpu.vector_store %arg17[%c0_79, %c0_80], %201 {strides = array<i32>} : memref<8x32xf32, #tpu.memory_space<vmem>>, vector<8x32xf32>,
    %c1_i32 = arith.constant 1 : i32
    %203 = arith.cmpi eq, %arg1, %c1_i32 : i32
    %204 = arith.extui %203 : i1 to i32
    %c0_i32_81 = arith.constant 0 : i32
    %205 = arith.cmpi ne, %204, %c0_i32_81 : i32
    scf.if %205 {
      %c0_82 = arith.constant 0 : index
      %c0_83 = arith.constant 0 : index
      %206 = vector.load %arg17[%c0_82, %c0_83] : memref<8x32xf32, #tpu.memory_space<vmem>>, vector<8x32xf32>
      %c0_84 = arith.constant 0 : index
      %c0_85 = arith.constant 0 : index
      %c0_86 = arith.constant 0 : index
      %207 = vector.load %arg16[%c0_84, %c0_85, %c0_86] : memref<1x8x32xf32, #tpu.memory_space<vmem>>, vector<1x8x32xf32>
      %208 = vector.shape_cast %207 : vector<1x8x32xf32> to vector<8x32xf32>
      %209 = vector.shape_cast %206 : vector<8x32xf32> to vector<1x8x32xf32>
      tpu.vector_store %arg16[%c0_84, %c0_85, %c0_86], %209 {strides = array<i32>} : memref<1x8x32xf32, #tpu.memory_space<vmem>>, vector<1x8x32xf32>,
    } else {
    }
    return
  }
  func.func @transform_0(%arg0: i32, %arg1: i32) -> (i32, i32, i32) {
    %c0_i32 = arith.constant 0 : i32
    %c0_i32_0 = arith.constant 0 : i32
    %c0_i32_1 = arith.constant 0 : i32
    return %arg0, %c0_i32, %c0_i32_0 : i32, i32, i32
  }
  func.func @transform_1(%arg0: i32, %arg1: i32) -> (i32, i32, i32) {
    %c0_i32 = arith.constant 0 : i32
    %c0_i32_0 = arith.constant 0 : i32
    %c0_i32_1 = arith.constant 0 : i32
    %c0_i32_2 = arith.constant 0 : i32
    return %c0_i32, %c0_i32_0, %c0_i32_1 : i32, i32, i32
  }
  func.func @transform_2(%arg0: i32, %arg1: i32) -> (i32, i32, i32) {
    %c0_i32 = arith.constant 0 : i32
    %c0_i32_0 = arith.constant 0 : i32
    %c0_i32_1 = arith.constant 0 : i32
    return %arg1, %c0_i32, %c0_i32_0 : i32, i32, i32
  }
  func.func @transform_3(%arg0: i32, %arg1: i32) -> (i32, i32, i32) {
    %c0_i32 = arith.constant 0 : i32
    %c0_i32_0 = arith.constant 0 : i32
    %c0_i32_1 = arith.constant 0 : i32
    return %arg1, %c0_i32, %c0_i32_0 : i32, i32, i32
  }
  func.func @transform_4(%arg0: i32, %arg1: i32) -> (i32, i32, i32) {
    %c0_i32 = arith.constant 0 : i32
    %c0_i32_0 = arith.constant 0 : i32
    %c0_i32_1 = arith.constant 0 : i32
    return %arg1, %c0_i32, %c0_i32_0 : i32, i32, i32
  }
  func.func @transform_5(%arg0: i32, %arg1: i32) -> (i32, i32, i32) {
    %c0_i32 = arith.constant 0 : i32
    %c0_i32_0 = arith.constant 0 : i32
    %c0_i32_1 = arith.constant 0 : i32
    return %arg1, %c0_i32, %c0_i32_0 : i32, i32, i32
  }
  func.func @transform_6(%arg0: i32, %arg1: i32) -> (i32, i32, i32) {
    %c0_i32 = arith.constant 0 : i32
    %c0_i32_0 = arith.constant 0 : i32
    %c0_i32_1 = arith.constant 0 : i32
    return %arg1, %c0_i32, %c0_i32_0 : i32, i32, i32
  }
  func.func @transform_7(%arg0: i32, %arg1: i32) -> (i32, i32, i32) {
    %c0_i32 = arith.constant 0 : i32
    %c0_i32_0 = arith.constant 0 : i32
    %c0_i32_1 = arith.constant 0 : i32
    return %arg1, %c0_i32, %c0_i32_0 : i32, i32, i32
  }
  func.func @transform_8(%arg0: i32, %arg1: i32) -> (i32, i32, i32) {
    %c0_i32 = arith.constant 0 : i32
    %c0_i32_0 = arith.constant 0 : i32
    %c0_i32_1 = arith.constant 0 : i32
    return %arg1, %c0_i32, %c0_i32_0 : i32, i32, i32
  }
  func.func @transform_9(%arg0: i32, %arg1: i32) -> (i32, i32, i32) {
    %c0_i32 = arith.constant 0 : i32
    %c0_i32_0 = arith.constant 0 : i32
    %c0_i32_1 = arith.constant 0 : i32
    return %arg1, %c0_i32, %c0_i32_0 : i32, i32, i32
  }
  func.func @transform_10(%arg0: i32, %arg1: i32) -> (i32, i32, i32) {
    %c0_i32 = arith.constant 0 : i32
    %c0_i32_0 = arith.constant 0 : i32
    %c0_i32_1 = arith.constant 0 : i32
    return %arg1, %c0_i32, %c0_i32_0 : i32, i32, i32
  }
  func.func @transform_11(%arg0: i32, %arg1: i32) -> (i32, i32, i32) {
    %c0_i32 = arith.constant 0 : i32
    %c0_i32_0 = arith.constant 0 : i32
    %c0_i32_1 = arith.constant 0 : i32
    return %arg1, %c0_i32, %c0_i32_0 : i32, i32, i32
  }
  func.func @transform_12(%arg0: i32, %arg1: i32) -> (i32, i32, i32) {
    %c0_i32 = arith.constant 0 : i32
    %c0_i32_0 = arith.constant 0 : i32
    %c0_i32_1 = arith.constant 0 : i32
    return %arg1, %c0_i32, %c0_i32_0 : i32, i32, i32
  }
  func.func @transform_13(%arg0: i32, %arg1: i32) -> (i32, i32, i32) {
    %c0_i32 = arith.constant 0 : i32
    %c0_i32_0 = arith.constant 0 : i32
    %c0_i32_1 = arith.constant 0 : i32
    return %arg1, %c0_i32, %c0_i32_0 : i32, i32, i32
  }
  func.func @transform_14(%arg0: i32, %arg1: i32) -> (i32, i32, i32) {
    %c0_i32 = arith.constant 0 : i32
    %c0_i32_0 = arith.constant 0 : i32
    %c0_i32_1 = arith.constant 0 : i32
    return %arg0, %c0_i32, %c0_i32_0 : i32, i32, i32
  }
}

</mosaic_0001>

<llo_original>
// kernel: tpu_custom_call.1
$region0: #{tpu_custom_call.1}
  #allocation0 [shape = 'u32[]', space=smem, size = 0x4, offset = 0x4, fixed_abs, tag = 'smem constant byte address 0x4 - core index']
  #allocation1 [shape = 'u32[72,128]{1,0:T(1,128)}', space=vmem, size = 0x9000, scoped, tag = 'internal scratch']
  #allocation2 [shape = 'f32[8,32]{1,0:T(8,128)}', space=vmem, size = 0x1000, scoped, tag = 'scratch operand']
  %s0 = inlined_call_operand.vmem [shape: f32[2,8,32], index: 0, kind: input, shape index: {}]
  %s1 = inlined_call_operand.vmem [shape: f32[1,8,32], index: 1, kind: input, shape index: {}]
  %s2 = inlined_call_operand.vmem [shape: f32[2,1,32], index: 2, kind: input, shape index: {}]
  %s3 = inlined_call_operand.vmem [shape: f32[2,1,32], index: 3, kind: input, shape index: {}]
  %s4 = inlined_call_operand.vmem [shape: bf16[2,32,96], index: 4, kind: input, shape index: {}]
  %s5 = inlined_call_operand.vmem [shape: f32[2,1,96], index: 5, kind: input, shape index: {}]
  %s6 = inlined_call_operand.vmem [shape: bf16[2,32,32], index: 6, kind: input, shape index: {}]
  %s7 = inlined_call_operand.vmem [shape: f32[2,1,32], index: 7, kind: input, shape index: {}]
  %s8 = inlined_call_operand.vmem [shape: f32[2,1,32], index: 8, kind: input, shape index: {}]
  %s9 = inlined_call_operand.vmem [shape: f32[2,1,32], index: 9, kind: input, shape index: {}]
  %s10 = inlined_call_operand.vmem [shape: bf16[2,32,128], index: 10, kind: input, shape index: {}]
  %s11 = inlined_call_operand.vmem [shape: f32[2,1,128], index: 11, kind: input, shape index: {}]
  %s12 = inlined_call_operand.vmem [shape: bf16[2,128,32], index: 12, kind: input, shape index: {}]
  %s13 = inlined_call_operand.vmem [shape: f32[2,1,32], index: 13, kind: input, shape index: {}]
  %s14 = inlined_call_operand.hbm [shape: f32[2,8,32], index: 14, kind: output, shape index: {}]
  %s15 = sld [smem:[#allocation0]]
  $region97: #{tpu_custom_call.1} parent=0
    _
  %s17 = ssub.s32 1, %s15
  %s18 = scalar_select 0, %s17, %s15
  $region1: #{tpu_custom_call.1} parent=0
    #allocation3 [shape = 'u8[8192]{0}', space=vmem, size = 0x2000, scoped, tag = 'output window, operand 0']
    #allocation4 [shape = 's32[2]{0}', space=sflag, size = 0x8, scoped, tag = 'scoped memory for tpu_custom_call.1']
    %19 = vsyncpa [#allocation4], 0
    %s20 = scalar_lea.sflag [#allocation4], 1
    %21 = vsyncpa %s20, 0
    loop: start=0, step=1, limit=6
    $region2: #{tpu_custom_call.1} parent=1 // loop_pre_header
      _
    $region3: #{tpu_custom_call.1} parent=1 // loop_header
      %s23 = sphi 0, %s27
      %p24 = scmp.ge.s32.totalorder %s23, 6
      %s30 = sphi 0, %s42
      %s31 = sphi 0, %s38
      %s32 = sphi 0, %s30
      %s33 = sphi 0, %s31
      %s34 = sphi 0, %s32
      %s35 = sphi 0, %s33
      %s45 = sphi 0, %s47
      %s48 = sphi 0, %s45
      %s49 = sphi 0, %s48
      %s65 = sphi 0, %s49
      %s69 = sphi 0, %s69
      %s71 = sphi 0, %s69
      %s72 = sphi 0, %s71
      %s86 = sphi 0, %s72
      %s92 = sphi 0, %s94
      %s95 = sphi 0, %s92
      %s96 = sphi 0, %s95
      %s112 = sphi 0, %s96
      %s118 = sphi 0, %s120
      %s121 = sphi 0, %s118
      %s122 = sphi 0, %s121
      %s138 = sphi 0, %s122
      %s144 = sphi 0, %s146
      %s147 = sphi 0, %s144
      %s148 = sphi 0, %s147
      %s164 = sphi 0, %s148
      %s170 = sphi 0, %s172
      %s173 = sphi 0, %s170
      %s174 = sphi 0, %s173
      %s190 = sphi 0, %s174
      %s196 = sphi 0, %s198
      %s199 = sphi 0, %s196
      %s200 = sphi 0, %s199
      %s216 = sphi 0, %s200
      %s222 = sphi 0, %s224
      %s225 = sphi 0, %s222
      %s226 = sphi 0, %s225
      %s242 = sphi 0, %s226
      %s248 = sphi 0, %s250
      %s251 = sphi 0, %s248
      %s252 = sphi 0, %s251
      %s268 = sphi 0, %s252
      %s274 = sphi 0, %s276
      %s277 = sphi 0, %s274
      %s278 = sphi 0, %s277
      %s294 = sphi 0, %s278
      %s300 = sphi 0, %s302
      %s303 = sphi 0, %s300
      %s304 = sphi 0, %s303
      %s320 = sphi 0, %s304
      %s326 = sphi 0, %s328
      %s329 = sphi 0, %s326
      %s330 = sphi 0, %s329
      %s346 = sphi 0, %s330
      %s352 = sphi 0, %s354
      %s355 = sphi 0, %s352
      %s356 = sphi 0, %s355
      %s372 = sphi 0, %s356
      %s378 = sphi 0, %s380
      %s381 = sphi 0, %s378
      %s382 = sphi 0, %s381
      %s398 = sphi 0, %s382
      %s404 = sphi 0, %s406
      %s407 = sphi 0, %s404
      %s408 = sphi 0, %s407
      %s424 = sphi 0, %s408
    $region4: #{tpu_custom_call.1} parent=1 // loop_header_branch
      %26 = sbr.rel (%p24) target = $region8
    $region5: #{tpu_custom_call.1} parent=1 // loop_body
      %s28 = ssub.s32 %s23, 1
      %s29 = ssub.s32 %s23, 2
      %s36 = sadd.s32 1, %s31
      %p37 = scmp.ge.s32.totalorder %s36, 2
      %s38 = scalar_select %p37, 0, %s36
      %s39 = sadd.s32 1, %s30
      %s40 = scalar_select %p37, %s39, %s30
      %p41 = scmp.ge.s32.totalorder %s40, 2
      %s42 = scalar_select %p41, 0, %s40
      %s43 = ssub.s32 %s30, %s42
      %p44 = scmp.eq.s32.totalorder %s43, 0
      %s46 = sadd.s32 %s45, 1
      %s47 = scalar_select %p44, %s45, %s46
      %p50 = pneg %p44
      %p51 = scmp.eq.s32.totalorder %s23, 3
      %p52 = por %p50, %p51
      %p53 = scmp.ne.s32.totalorder %s45, %s48
      %p54 = scmp.eq.s32.totalorder %s23, 0
      %p55 = por %p53, %p54
      %p56 = scmp.ne.s32.totalorder %s45, %s48
      %p57 = scmp.eq.s32.totalorder %s28, 3
      %p58 = por %p56, %p57
      %p59 = scmp.ne.s32.totalorder %s48, %s49
      %p60 = scmp.eq.s32.totalorder %s28, 0
      %p61 = por %p59, %p60
      %p62 = scmp.ne.s32.totalorder %s48, %s49
      %p63 = scmp.eq.s32.totalorder %s29, 3
      %p64 = por %p62, %p63
      %p66 = scmp.ne.s32.totalorder %s49, %s65
      %p67 = scmp.eq.s32.totalorder %s29, 0
      %p68 = por %p66, %p67
      %s70 = sadd.s32 %s69, 1
      %p73 = scmp.eq.s32.totalorder %s23, 3
      %p74 = scmp.ne.s32.totalorder %s69, %s71
      %p75 = scmp.eq.s32.totalorder %s23, 0
      %p76 = por %p74, %p75
      %p77 = scmp.ne.s32.totalorder %s69, %s71
      %p78 = scmp.eq.s32.totalorder %s28, 3
      %p79 = por %p77, %p78
      %p80 = scmp.ne.s32.totalorder %s71, %s72
      %p81 = scmp.eq.s32.totalorder %s28, 0
      %p82 = por %p80, %p81
      %p83 = scmp.ne.s32.totalorder %s71, %s72
      %p84 = scmp.eq.s32.totalorder %s29, 3
      %p85 = por %p83, %p84
      %p87 = scmp.ne.s32.totalorder %s72, %s86
      %p88 = scmp.eq.s32.totalorder %s29, 0
      %p89 = por %p87, %p88
      %s90 = ssub.s32 %s31, %s38
      %p91 = scmp.eq.s32.totalorder %s90, 0
      %s93 = sadd.s32 %s92, 1
      %s94 = scalar_select %p91, %s92, %s93
      %p97 = pneg %p91
      %p98 = scmp.eq.s32.totalorder %s23, 3
      %p99 = por %p97, %p98
      %p100 = scmp.ne.s32.totalorder %s92, %s95
      %p101 = scmp.eq.s32.totalorder %s23, 0
      %p102 = por %p100, %p101
      %p103 = scmp.ne.s32.totalorder %s92, %s95
      %p104 = scmp.eq.s32.totalorder %s28, 3
      %p105 = por %p103, %p104
      %p106 = scmp.ne.s32.totalorder %s95, %s96
      %p107 = scmp.eq.s32.totalorder %s28, 0
      %p108 = por %p106, %p107
      %p109 = scmp.ne.s32.totalorder %s95, %s96
      %p110 = scmp.eq.s32.totalorder %s29, 3
      %p111 = por %p109, %p110
      %p113 = scmp.ne.s32.totalorder %s96, %s112
      %p114 = scmp.eq.s32.totalorder %s29, 0
      %p115 = por %p113, %p114
      %s116 = ssub.s32 %s31, %s38
      %p117 = scmp.eq.s32.totalorder %s116, 0
      %s119 = sadd.s32 %s118, 1
      %s120 = scalar_select %p117, %s118, %s119
      %p123 = pneg %p117
      %p124 = scmp.eq.s32.totalorder %s23, 3
      %p125 = por %p123, %p124
      %p126 = scmp.ne.s32.totalorder %s118, %s121
      %p127 = scmp.eq.s32.totalorder %s23, 0
      %p128 = por %p126, %p127
      %p129 = scmp.ne.s32.totalorder %s118, %s121
      %p130 = scmp.eq.s32.totalorder %s28, 3
      %p131 = por %p129, %p130
      %p132 = scmp.ne.s32.totalorder %s121, %s122
      %p133 = scmp.eq.s32.totalorder %s28, 0
      %p134 = por %p132, %p133
      %p135 = scmp.ne.s32.totalorder %s121, %s122
      %p136 = scmp.eq.s32.totalorder %s29, 3
      %p137 = por %p135, %p136
      %p139 = scmp.ne.s32.totalorder %s122, %s138
      %p140 = scmp.eq.s32.totalorder %s29, 0
      %p141 = por %p139, %p140
      %s142 = ssub.s32 %s31, %s38
      %p143 = scmp.eq.s32.totalorder %s142, 0
      %s145 = sadd.s32 %s144, 1
      %s146 = scalar_select %p143, %s144, %s145
      %p149 = pneg %p143
      %p150 = scmp.eq.s32.totalorder %s23, 3
      %p151 = por %p149, %p150
      %p152 = scmp.ne.s32.totalorder %s144, %s147
      %p153 = scmp.eq.s32.totalorder %s23, 0
      %p154 = por %p152, %p153
      %p155 = scmp.ne.s32.totalorder %s144, %s147
      %p156 = scmp.eq.s32.totalorder %s28, 3
      %p157 = por %p155, %p156
      %p158 = scmp.ne.s32.totalorder %s147, %s148
      %p159 = scmp.eq.s32.totalorder %s28, 0
      %p160 = por %p158, %p159
      %p161 = scmp.ne.s32.totalorder %s147, %s148
      %p162 = scmp.eq.s32.totalorder %s29, 3
      %p163 = por %p161, %p162
      %p165 = scmp.ne.s32.totalorder %s148, %s164
      %p166 = scmp.eq.s32.totalorder %s29, 0
      %p167 = por %p165, %p166
      %s168 = ssub.s32 %s31, %s38
      %p169 = scmp.eq.s32.totalorder %s168, 0
      %s171 = sadd.s32 %s170, 1
      %s172 = scalar_select %p169, %s170, %s171
      %p175 = pneg %p169
      %p176 = scmp.eq.s32.totalorder %s23, 3
      %p177 = por %p175, %p176
      %p178 = scmp.ne.s32.totalorder %s170, %s173
      %p179 = scmp.eq.s32.totalorder %s23, 0
      %p180 = por %p178, %p179
      %p181 = scmp.ne.s32.totalorder %s170, %s173
      %p182 = scmp.eq.s32.totalorder %s28, 3
      %p183 = por %p181, %p182
      %p184 = scmp.ne.s32.totalorder %s173, %s174
      %p185 = scmp.eq.s32.totalorder %s28, 0
      %p186 = por %p184, %p185
      %p187 = scmp.ne.s32.totalorder %s173, %s174
      %p188 = scmp.eq.s32.totalorder %s29, 3
      %p189 = por %p187, %p188
      %p191 = scmp.ne.s32.totalorder %s174, %s190
      %p192 = scmp.eq.s32.totalorder %s29, 0
      %p193 = por %p191, %p192
      %s194 = ssub.s32 %s31, %s38
      %p195 = scmp.eq.s32.totalorder %s194, 0
      %s197 = sadd.s32 %s196, 1
      %s198 = scalar_select %p195, %s196, %s197
      %p201 = pneg %p195
      %p202 = scmp.eq.s32.totalorder %s23, 3
      %p203 = por %p201, %p202
      %p204 = scmp.ne.s32.totalorder %s196, %s199
      %p205 = scmp.eq.s32.totalorder %s23, 0
      %p206 = por %p204, %p205
      %p207 = scmp.ne.s32.totalorder %s196, %s199
      %p208 = scmp.eq.s32.totalorder %s28, 3
      %p209 = por %p207, %p208
      %p210 = scmp.ne.s32.totalorder %s199, %s200
      %p211 = scmp.eq.s32.totalorder %s28, 0
      %p212 = por %p210, %p211
      %p213 = scmp.ne.s32.totalorder %s199, %s200
      %p214 = scmp.eq.s32.totalorder %s29, 3
      %p215 = por %p213, %p214
      %p217 = scmp.ne.s32.totalorder %s200, %s216
      %p218 = scmp.eq.s32.totalorder %s29, 0
      %p219 = por %p217, %p218
      %s220 = ssub.s32 %s31, %s38
      %p221 = scmp.eq.s32.totalorder %s220, 0
      %s223 = sadd.s32 %s222, 1
      %s224 = scalar_select %p221, %s222, %s223
      %p227 = pneg %p221
      %p228 = scmp.eq.s32.totalorder %s23, 3
      %p229 = por %p227, %p228
      %p230 = scmp.ne.s32.totalorder %s222, %s225
      %p231 = scmp.eq.s32.totalorder %s23, 0
      %p232 = por %p230, %p231
      %p233 = scmp.ne.s32.totalorder %s222, %s225
      %p234 = scmp.eq.s32.totalorder %s28, 3
      %p235 = por %p233, %p234
      %p236 = scmp.ne.s32.totalorder %s225, %s226
      %p237 = scmp.eq.s32.totalorder %s28, 0
      %p238 = por %p236, %p237
      %p239 = scmp.ne.s32.totalorder %s225, %s226
      %p240 = scmp.eq.s32.totalorder %s29, 3
      %p241 = por %p239, %p240
      %p243 = scmp.ne.s32.totalorder %s226, %s242
      %p244 = scmp.eq.s32.totalorder %s29, 0
      %p245 = por %p243, %p244
      %s246 = ssub.s32 %s31, %s38
      %p247 = scmp.eq.s32.totalorder %s246, 0
      %s249 = sadd.s32 %s248, 1
      %s250 = scalar_select %p247, %s248, %s249
      %p253 = pneg %p247
      %p254 = scmp.eq.s32.totalorder %s23, 3
      %p255 = por %p253, %p254
      %p256 = scmp.ne.s32.totalorder %s248, %s251
      %p257 = scmp.eq.s32.totalorder %s23, 0
      %p258 = por %p256, %p257
      %p259 = scmp.ne.s32.totalorder %s248, %s251
      %p260 = scmp.eq.s32.totalorder %s28, 3
      %p261 = por %p259, %p260
      %p262 = scmp.ne.s32.totalorder %s251, %s252
      %p263 = scmp.eq.s32.totalorder %s28, 0
      %p264 = por %p262, %p263
      %p265 = scmp.ne.s32.totalorder %s251, %s252
      %p266 = scmp.eq.s32.totalorder %s29, 3
      %p267 = por %p265, %p266
      %p269 = scmp.ne.s32.totalorder %s252, %s268
      %p270 = scmp.eq.s32.totalorder %s29, 0
      %p271 = por %p269, %p270
      %s272 = ssub.s32 %s31, %s38
      %p273 = scmp.eq.s32.totalorder %s272, 0
      %s275 = sadd.s32 %s274, 1
      %s276 = scalar_select %p273, %s274, %s275
      %p279 = pneg %p273
      %p280 = scmp.eq.s32.totalorder %s23, 3
      %p281 = por %p279, %p280
      %p282 = scmp.ne.s32.totalorder %s274, %s277
      %p283 = scmp.eq.s32.totalorder %s23, 0
      %p284 = por %p282, %p283
      %p285 = scmp.ne.s32.totalorder %s274, %s277
      %p286 = scmp.eq.s32.totalorder %s28, 3
      %p287 = por %p285, %p286
      %p288 = scmp.ne.s32.totalorder %s277, %s278
      %p289 = scmp.eq.s32.totalorder %s28, 0
      %p290 = por %p288, %p289
      %p291 = scmp.ne.s32.totalorder %s277, %s278
      %p292 = scmp.eq.s32.totalorder %s29, 3
      %p293 = por %p291, %p292
      %p295 = scmp.ne.s32.totalorder %s278, %s294
      %p296 = scmp.eq.s32.totalorder %s29, 0
      %p297 = por %p295, %p296
      %s298 = ssub.s32 %s31, %s38
      %p299 = scmp.eq.s32.totalorder %s298, 0
      %s301 = sadd.s32 %s300, 1
      %s302 = scalar_select %p299, %s300, %s301
      %p305 = pneg %p299
      %p306 = scmp.eq.s32.totalorder %s23, 3
      %p307 = por %p305, %p306
      %p308 = scmp.ne.s32.totalorder %s300, %s303
      %p309 = scmp.eq.s32.totalorder %s23, 0
      %p310 = por %p308, %p309
      %p311 = scmp.ne.s32.totalorder %s300, %s303
      %p312 = scmp.eq.s32.totalorder %s28, 3
      %p313 = por %p311, %p312
      %p314 = scmp.ne.s32.totalorder %s303, %s304
      %p315 = scmp.eq.s32.totalorder %s28, 0
      %p316 = por %p314, %p315
      %p317 = scmp.ne.s32.totalorder %s303, %s304
      %p318 = scmp.eq.s32.totalorder %s29, 3
      %p319 = por %p317, %p318
      %p321 = scmp.ne.s32.totalorder %s304, %s320
      %p322 = scmp.eq.s32.totalorder %s29, 0
      %p323 = por %p321, %p322
      %s324 = ssub.s32 %s31, %s38
      %p325 = scmp.eq.s32.totalorder %s324, 0
      %s327 = sadd.s32 %s326, 1
      %s328 = scalar_select %p325, %s326, %s327
      %p331 = pneg %p325
      %p332 = scmp.eq.s32.totalorder %s23, 3
      %p333 = por %p331, %p332
      %p334 = scmp.ne.s32.totalorder %s326, %s329
      %p335 = scmp.eq.s32.totalorder %s23, 0
      %p336 = por %p334, %p335
      %p337 = scmp.ne.s32.totalorder %s326, %s329
      %p338 = scmp.eq.s32.totalorder %s28, 3
      %p339 = por %p337, %p338
      %p340 = scmp.ne.s32.totalorder %s329, %s330
      %p341 = scmp.eq.s32.totalorder %s28, 0
      %p342 = por %p340, %p341
      %p343 = scmp.ne.s32.totalorder %s329, %s330
      %p344 = scmp.eq.s32.totalorder %s29, 3
      %p345 = por %p343, %p344
      %p347 = scmp.ne.s32.totalorder %s330, %s346
      %p348 = scmp.eq.s32.totalorder %s29, 0
      %p349 = por %p347, %p348
      %s350 = ssub.s32 %s31, %s38
      %p351 = scmp.eq.s32.totalorder %s350, 0
      %s353 = sadd.s32 %s352, 1
      %s354 = scalar_select %p351, %s352, %s353
      %p357 = pneg %p351
      %p358 = scmp.eq.s32.totalorder %s23, 3
      %p359 = por %p357, %p358
      %p360 = scmp.ne.s32.totalorder %s352, %s355
      %p361 = scmp.eq.s32.totalorder %s23, 0
      %p362 = por %p360, %p361
      %p363 = scmp.ne.s32.totalorder %s352, %s355
      %p364 = scmp.eq.s32.totalorder %s28, 3
      %p365 = por %p363, %p364
      %p366 = scmp.ne.s32.totalorder %s355, %s356
      %p367 = scmp.eq.s32.totalorder %s28, 0
      %p368 = por %p366, %p367
      %p369 = scmp.ne.s32.totalorder %s355, %s356
      %p370 = scmp.eq.s32.totalorder %s29, 3
      %p371 = por %p369, %p370
      %p373 = scmp.ne.s32.totalorder %s356, %s372
      %p374 = scmp.eq.s32.totalorder %s29, 0
      %p375 = por %p373, %p374
      %s376 = ssub.s32 %s31, %s38
      %p377 = scmp.eq.s32.totalorder %s376, 0
      %s379 = sadd.s32 %s378, 1
      %s380 = scalar_select %p377, %s378, %s379
      %p383 = pneg %p377
      %p384 = scmp.eq.s32.totalorder %s23, 3
      %p385 = por %p383, %p384
      %p386 = scmp.ne.s32.totalorder %s378, %s381
      %p387 = scmp.eq.s32.totalorder %s23, 0
      %p388 = por %p386, %p387
      %p389 = scmp.ne.s32.totalorder %s378, %s381
      %p390 = scmp.eq.s32.totalorder %s28, 3
      %p391 = por %p389, %p390
      %p392 = scmp.ne.s32.totalorder %s381, %s382
      %p393 = scmp.eq.s32.totalorder %s28, 0
      %p394 = por %p392, %p393
      %p395 = scmp.ne.s32.totalorder %s381, %s382
      %p396 = scmp.eq.s32.totalorder %s29, 3
      %p397 = por %p395, %p396
      %p399 = scmp.ne.s32.totalorder %s382, %s398
      %p400 = scmp.eq.s32.totalorder %s29, 0
      %p401 = por %p399, %p400
      %s402 = ssub.s32 %s30, %s42
      %p403 = scmp.eq.s32.totalorder %s402, 0
      %s405 = sadd.s32 %s404, 1
      %s406 = scalar_select %p403, %s404, %s405
      %p409 = pneg %p403
      %p410 = scmp.eq.s32.totalorder %s23, 3
      %p411 = por %p409, %p410
      %p412 = scmp.ne.s32.totalorder %s404, %s407
      %p413 = scmp.eq.s32.totalorder %s23, 0
      %p414 = por %p412, %p413
      %p415 = scmp.ne.s32.totalorder %s404, %s407
      %p416 = scmp.eq.s32.totalorder %s28, 3
      %p417 = por %p415, %p416
      %p418 = scmp.ne.s32.totalorder %s407, %s408
      %p419 = scmp.eq.s32.totalorder %s28, 0
      %p420 = por %p418, %p419
      %p421 = scmp.ne.s32.totalorder %s407, %s408
      %p422 = scmp.eq.s32.totalorder %s29, 3
      %p423 = por %p421, %p422
      %p425 = scmp.ne.s32.totalorder %s408, %s424
      %p426 = scmp.eq.s32.totalorder %s29, 0
      %p427 = por %p425, %p426
      %p428 = scmp.le.s32.totalorder 1, %s23
      %p429 = scmp.lt.s32.totalorder %s23, 5
      %p430 = pnand %p428, %p429
      %p431 = pneg %p430
      // Predicated region
      $region9: #{tpu_custom_call.1} parent=5 // pred_check
        _
      $region10: #{tpu_custom_call.1} parent=5 // pred_check_branch
        %433 = sbr.rel (%p430) target = $region12
      $region11: #{tpu_custom_call.1} parent=5 // pred_region
        %s434 = ssub.s32 %s23, 1
        // Predicated region
        $region13: #{tpu_custom_call.1} parent=11 // pred_check
          %p435 = pneg %p82
        $region14: #{tpu_custom_call.1} parent=11 // pred_check_branch
          %437 = sbr.rel (%p435) target = $region16
        $region15: #{tpu_custom_call.1} parent=11 // pred_region
          _
        $region16: #{tpu_custom_call.1} parent=11 // pred_fallthru
          _
      $region12: #{tpu_custom_call.1} parent=5 // pred_fallthru
        _
      %p438 = scmp.lt.s32.totalorder %s23, 4
      // Predicated region
      $region17: #{tpu_custom_call.1} parent=5 // pred_check
        %p439 = pneg %p438
      $region18: #{tpu_custom_call.1} parent=5 // pred_check_branch
        %441 = sbr.rel (%p439) target = $region20
      $region19: #{tpu_custom_call.1} parent=5 // pred_region
        // Predicated region
        $region21: #{tpu_custom_call.1} parent=19 // pred_check
          %p442 = pneg %p55
        $region22: #{tpu_custom_call.1} parent=19 // pred_check_branch
          %444 = sbr.rel (%p442) target = $region24
        $region23: #{tpu_custom_call.1} parent=19 // pred_region
          %p445 = scmp.lt.s32.totalorder %s30, 1
          %s446 = scalar_select %p445, %s30, 1
          %s447 = smul.addr %s446, 8
          %s448 = scalar_lea.vmem %s0, %s447
        $region24: #{tpu_custom_call.1} parent=19 // pred_fallthru
          _
        // Predicated region
        $region25: #{tpu_custom_call.1} parent=19 // pred_check
          %p449 = pneg %p102
        $region26: #{tpu_custom_call.1} parent=19 // pred_check_branch
          %451 = sbr.rel (%p449) target = $region28
        $region27: #{tpu_custom_call.1} parent=19 // pred_region
          %p452 = scmp.lt.s32.totalorder %s31, 1
          %s453 = scalar_select %p452, %s31, 1
          %s454 = scalar_lea.vmem %s2, %s453
        $region28: #{tpu_custom_call.1} parent=19 // pred_fallthru
          _
        // Predicated region
        $region29: #{tpu_custom_call.1} parent=19 // pred_check
          %p455 = pneg %p128
        $region30: #{tpu_custom_call.1} parent=19 // pred_check_branch
          %457 = sbr.rel (%p455) target = $region32
        $region31: #{tpu_custom_call.1} parent=19 // pred_region
          %p458 = scmp.lt.s32.totalorder %s31, 1
          %s459 = scalar_select %p458, %s31, 1
          %s460 = scalar_lea.vmem %s3, %s459
        $region32: #{tpu_custom_call.1} parent=19 // pred_fallthru
          _
        // Predicated region
        $region33: #{tpu_custom_call.1} parent=19 // pred_check
          %p461 = pneg %p154
        $region34: #{tpu_custom_call.1} parent=19 // pred_check_branch
          %463 = sbr.rel (%p461) target = $region36
        $region35: #{tpu_custom_call.1} parent=19 // pred_region
          %p464 = scmp.lt.s32.totalorder %s31, 1
          %s465 = scalar_select %p464, %s31, 1
          %s466 = smul.addr %s465, 4
          %s467 = smul.addr %s466, 4
          %s468 = scalar_lea.vmem %s4, %s467
        $region36: #{tpu_custom_call.1} parent=19 // pred_fallthru
          _
        // Predicated region
        $region37: #{tpu_custom_call.1} parent=19 // pred_check
          %p469 = pneg %p180
        $region38: #{tpu_custom_call.1} parent=19 // pred_check_branch
          %471 = sbr.rel (%p469) target = $region40
        $region39: #{tpu_custom_call.1} parent=19 // pred_region
          %p472 = scmp.lt.s32.totalorder %s31, 1
          %s473 = scalar_select %p472, %s31, 1
          %s474 = scalar_lea.vmem %s5, %s473
        $region40: #{tpu_custom_call.1} parent=19 // pred_fallthru
          _
        // Predicated region
        $region41: #{tpu_custom_call.1} parent=19 // pred_check
          %p475 = pneg %p206
        $region42: #{tpu_custom_call.1} parent=19 // pred_check_branch
          %477 = sbr.rel (%p475) target = $region44
        $region43: #{tpu_custom_call.1} parent=19 // pred_region
          %p478 = scmp.lt.s32.totalorder %s31, 1
          %s479 = scalar_select %p478, %s31, 1
          %s480 = smul.addr %s479, 4
          %s481 = smul.addr %s480, 4
          %s482 = scalar_lea.vmem %s6, %s481
        $region44: #{tpu_custom_call.1} parent=19 // pred_fallthru
          _
        // Predicated region
        $region45: #{tpu_custom_call.1} parent=19 // pred_check
          %p483 = pneg %p232
        $region46: #{tpu_custom_call.1} parent=19 // pred_check_branch
          %485 = sbr.rel (%p483) target = $region48
        $region47: #{tpu_custom_call.1} parent=19 // pred_region
          %p486 = scmp.lt.s32.totalorder %s31, 1
          %s487 = scalar_select %p486, %s31, 1
          %s488 = scalar_lea.vmem %s7, %s487
        $region48: #{tpu_custom_call.1} parent=19 // pred_fallthru
          _
        // Predicated region
        $region49: #{tpu_custom_call.1} parent=19 // pred_check
          %p489 = pneg %p258
        $region50: #{tpu_custom_call.1} parent=19 // pred_check_branch
          %491 = sbr.rel (%p489) target = $region52
        $region51: #{tpu_custom_call.1} parent=19 // pred_region
          %p492 = scmp.lt.s32.totalorder %s31, 1
          %s493 = scalar_select %p492, %s31, 1
          %s494 = scalar_lea.vmem %s8, %s493
        $region52: #{tpu_custom_call.1} parent=19 // pred_fallthru
          _
        // Predicated region
        $region53: #{tpu_custom_call.1} parent=19 // pred_check
          %p495 = pneg %p284
        $region54: #{tpu_custom_call.1} parent=19 // pred_check_branch
          %497 = sbr.rel (%p495) target = $region56
        $region55: #{tpu_custom_call.1} parent=19 // pred_region
          %p498 = scmp.lt.s32.totalorder %s31, 1
          %s499 = scalar_select %p498, %s31, 1
          %s500 = scalar_lea.vmem %s9, %s499
        $region56: #{tpu_custom_call.1} parent=19 // pred_fallthru
          _
        // Predicated region
        $region57: #{tpu_custom_call.1} parent=19 // pred_check
          %p501 = pneg %p310
        $region58: #{tpu_custom_call.1} parent=19 // pred_check_branch
          %503 = sbr.rel (%p501) target = $region60
        $region59: #{tpu_custom_call.1} parent=19 // pred_region
          %p504 = scmp.lt.s32.totalorder %s31, 1
          %s505 = scalar_select %p504, %s31, 1
          %s506 = smul.addr %s505, 4
          %s507 = smul.addr %s506, 4
          %s508 = scalar_lea.vmem %s10, %s507
        $region60: #{tpu_custom_call.1} parent=19 // pred_fallthru
          _
        // Predicated region
        $region61: #{tpu_custom_call.1} parent=19 // pred_check
          %p509 = pneg %p336
        $region62: #{tpu_custom_call.1} parent=19 // pred_check_branch
          %511 = sbr.rel (%p509) target = $region64
        $region63: #{tpu_custom_call.1} parent=19 // pred_region
          %p512 = scmp.lt.s32.totalorder %s31, 1
          %s513 = scalar_select %p512, %s31, 1
          %s514 = scalar_lea.vmem %s11, %s513
        $region64: #{tpu_custom_call.1} parent=19 // pred_fallthru
          _
        // Predicated region
        $region65: #{tpu_custom_call.1} parent=19 // pred_check
          %p515 = pneg %p362
        $region66: #{tpu_custom_call.1} parent=19 // pred_check_branch
          %517 = sbr.rel (%p515) target = $region68
        $region67: #{tpu_custom_call.1} parent=19 // pred_region
          %p518 = scmp.lt.s32.totalorder %s31, 1
          %s519 = scalar_select %p518, %s31, 1
          %s520 = smul.addr %s519, 16
          %s521 = smul.addr %s520, 4
          %s522 = scalar_lea.vmem %s12, %s521
        $region68: #{tpu_custom_call.1} parent=19 // pred_fallthru
          _
        // Predicated region
        $region69: #{tpu_custom_call.1} parent=19 // pred_check
          %p523 = pneg %p388
        $region70: #{tpu_custom_call.1} parent=19 // pred_check_branch
          %525 = sbr.rel (%p523) target = $region72
        $region71: #{tpu_custom_call.1} parent=19 // pred_region
          %p526 = scmp.lt.s32.totalorder %s31, 1
          %s527 = scalar_select %p526, %s31, 1
          %s528 = scalar_lea.vmem %s13, %s527
        $region72: #{tpu_custom_call.1} parent=19 // pred_fallthru
          _
      $region20: #{tpu_custom_call.1} parent=5 // pred_fallthru
        _
      %p529 = scmp.le.s32.totalorder 1, %s23
      %p530 = scmp.lt.s32.totalorder %s23, 5
      %p531 = pnand %p529, %p530
      %p532 = pneg %p531
      // Predicated region
      $region73: #{tpu_custom_call.1} parent=5 // pred_check
        _
      $region74: #{tpu_custom_call.1} parent=5 // pred_check_branch
        %534 = sbr.rel (%p531) target = $region76
      $region75: #{tpu_custom_call.1} parent=5 // pred_region
        %s535 = ssub.s32 %s23, 1
        %p536 = scmp.lt.s32.totalorder %s32, 1
        %s537 = scalar_select %p536, %s32, 1
        %s538 = smul.addr %s537, 8
        %s539 = scalar_lea.vmem %s0, %s538
        %p540 = pneg %p61
        %p541 = pneg %p58
        %p542 = pneg %p82
        %p543 = pneg %p79
        %p544 = scmp.lt.s32.totalorder %s33, 1
        %s545 = scalar_select %p544, %s33, 1
        %s546 = scalar_lea.vmem %s2, %s545
        %p547 = pneg %p108
        %p548 = pneg %p105
        %p549 = scmp.lt.s32.totalorder %s33, 1
        %s550 = scalar_select %p549, %s33, 1
        %s551 = scalar_lea.vmem %s3, %s550
        %p552 = pneg %p134
        %p553 = pneg %p131
        %p554 = scmp.lt.s32.totalorder %s33, 1
        %s555 = scalar_select %p554, %s33, 1
        %s556 = smul.addr %s555, 4
        %s557 = smul.addr %s556, 4
        %s558 = scalar_lea.vmem %s4, %s557
        %p559 = pneg %p160
        %p560 = pneg %p157
        %p561 = scmp.lt.s32.totalorder %s33, 1
        %s562 = scalar_select %p561, %s33, 1
        %s563 = scalar_lea.vmem %s5, %s562
        %p564 = pneg %p186
        %p565 = pneg %p183
        %p566 = scmp.lt.s32.totalorder %s33, 1
        %s567 = scalar_select %p566, %s33, 1
        %s568 = smul.addr %s567, 4
        %s569 = smul.addr %s568, 4
        %s570 = scalar_lea.vmem %s6, %s569
        %p571 = pneg %p212
        %p572 = pneg %p209
        %p573 = scmp.lt.s32.totalorder %s33, 1
        %s574 = scalar_select %p573, %s33, 1
        %s575 = scalar_lea.vmem %s7, %s574
        %p576 = pneg %p238
        %p577 = pneg %p235
        %p578 = scmp.lt.s32.totalorder %s33, 1
        %s579 = scalar_select %p578, %s33, 1
        %s580 = scalar_lea.vmem %s8, %s579
        %p581 = pneg %p264
        %p582 = pneg %p261
        %p583 = scmp.lt.s32.totalorder %s33, 1
        %s584 = scalar_select %p583, %s33, 1
        %s585 = scalar_lea.vmem %s9, %s584
        %p586 = pneg %p290
        %p587 = pneg %p287
        %p588 = scmp.lt.s32.totalorder %s33, 1
        %s589 = scalar_select %p588, %s33, 1
        %s590 = smul.addr %s589, 4
        %s591 = smul.addr %s590, 4
        %s592 = scalar_lea.vmem %s10, %s591
        %p593 = pneg %p316
        %p594 = pneg %p313
        %p595 = scmp.lt.s32.totalorder %s33, 1
        %s596 = scalar_select %p595, %s33, 1
        %s597 = scalar_lea.vmem %s11, %s596
        %p598 = pneg %p342
        %p599 = pneg %p339
        %p600 = scmp.lt.s32.totalorder %s33, 1
        %s601 = scalar_select %p600, %s33, 1
        %s602 = smul.addr %s601, 16
        %s603 = smul.addr %s602, 4
        %s604 = scalar_lea.vmem %s12, %s603
        %p605 = pneg %p368
        %p606 = pneg %p365
        %p607 = scmp.lt.s32.totalorder %s33, 1
        %s608 = scalar_select %p607, %s33, 1
        %s609 = scalar_lea.vmem %s13, %s608
        %p610 = pneg %p394
        %p611 = pneg %p391
        %p612 = pneg %p420
        %p613 = pneg %p417
        %s614 = sand.u32 %s407, 1
        %s615 = scalar_lea.sflag [#allocation4], %s614
        %s616 = sand.u32 %s407, 1
        %s617 = smul.addr %s616, 8
        %s618 = scalar_lea.vmem [#allocation3], %s617
        %p619 = scmp.lt.s32.totalorder %s32, 1
        %s620 = scalar_select %p619, %s32, 1
        %s621 = smul.addr %s620, 8
        %s622 = scalar_lea.vmem %s0, %s621
        %p623 = scmp.lt.s32.totalorder %s33, 1
        %s624 = scalar_select %p623, %s33, 1
        %s625 = scalar_lea.vmem %s2, %s624
        %p626 = scmp.lt.s32.totalorder %s33, 1
        %s627 = scalar_select %p626, %s33, 1
        %s628 = scalar_lea.vmem %s3, %s627
        %p629 = scmp.lt.s32.totalorder %s33, 1
        %s630 = scalar_select %p629, %s33, 1
        %s631 = smul.addr %s630, 4
        %s632 = smul.addr %s631, 4
        %s633 = scalar_lea.vmem %s4, %s632
        %p634 = scmp.lt.s32.totalorder %s33, 1
        %s635 = scalar_select %p634, %s33, 1
        %s636 = scalar_lea.vmem %s5, %s635
        %p637 = scmp.lt.s32.totalorder %s33, 1
        %s638 = scalar_select %p637, %s33, 1
        %s639 = smul.addr %s638, 4
        %s640 = smul.addr %s639, 4
        %s641 = scalar_lea.vmem %s6, %s640
        %p642 = scmp.lt.s32.totalorder %s33, 1
        %s643 = scalar_select %p642, %s33, 1
        %s644 = scalar_lea.vmem %s7, %s643
        %p645 = scmp.lt.s32.totalorder %s33, 1
        %s646 = scalar_select %p645, %s33, 1
        %s647 = scalar_lea.vmem %s8, %s646
        %p648 = scmp.lt.s32.totalorder %s33, 1
        %s649 = scalar_select %p648, %s33, 1
        %s650 = scalar_lea.vmem %s9, %s649
        %p651 = scmp.lt.s32.totalorder %s33, 1
        %s652 = scalar_select %p651, %s33, 1
        %s653 = smul.addr %s652, 4
        %s654 = smul.addr %s653, 4
        %s655 = scalar_lea.vmem %s10, %s654
        %p656 = scmp.lt.s32.totalorder %s33, 1
        %s657 = scalar_select %p656, %s33, 1
        %s658 = scalar_lea.vmem %s11, %s657
        %p659 = scmp.lt.s32.totalorder %s33, 1
        %s660 = scalar_select %p659, %s33, 1
        %s661 = smul.addr %s660, 16
        %s662 = smul.addr %s661, 4
        %s663 = scalar_lea.vmem %s12, %s662
        %p664 = scmp.lt.s32.totalorder %s33, 1
        %s665 = scalar_select %p664, %s33, 1
        %s666 = scalar_lea.vmem %s13, %s665
        %p668 = scmp.eq.s32.totalorder %s33, 0
        // Predicated region
        $region77: #{tpu_custom_call.1} parent=75 // pred_check
          %p669 = pneg %p668
        $region78: #{tpu_custom_call.1} parent=75 // pred_check_branch
          %671 = sbr.rel (%p669) target = $region80
        $region79: #{tpu_custom_call.1} parent=75 // pred_region
          %v672 = vld [vmem:[%s622] sm:$0xff]
          %v673 = vld [vmem:[%s1] sm:$0xff]
          %v674 = vadd.f32 %v672, %v673
          %vm675 = vcmask 261120
          %676 = vst.msk [vmem:[#allocation2] sm:$0xff] %vm675, %v674
        $region80: #{tpu_custom_call.1} parent=75 // pred_fallthru
          _
        %v677 = vld [vmem:[#allocation2] sm:$0xff]
        %v678 = vld [vmem:[%s625] sm:$0x1]
        %v679 = vld [vmem:[%s628] sm:$0x1]
        %vm680 = vcmask 261120
        %v681 = vsel %vm680, %v677, 0.0
        %682 = vadd.xlane.f32.xlu0 %v681
        %v683 = vpop.xlane.xlu0 %682
        %v684 = vrcp.pop 32.0
        %v685 = vmul.f32 32.0, %v684
        %v686 = vsub.f32 1.0, %v685
        %v687 = vmul.f32 %v684, %v686
        %v688 = vadd.f32 %v684, %v687
        %vm689 = vweird.f32 %v684
        %v690 = vsel %vm689, %v684, %v688
        %v691 = vmul.f32 %v683, %v690
        %v692 = vsub.f32 %v677, %v691
        %v693 = vmul.f32 %v692, %v692
        %v694 = vsel %vm680, %v693, 0.0
        %695 = vadd.xlane.f32.xlu0 %v694
        %v696 = vpop.xlane.xlu0 %695
        %v697 = vmul.f32 %v696, %v690
        %v698 = vadd.f32 %v697, 1e-05
        %v699 = vrsqrt.pop %v698
        %v700 = vmul.f32 %v699, %v698
        %v701 = vmul.f32 %v700, %v699
        %v702 = vmul.f32 0.5, %v701
        %v703 = vsub.f32 1.5, %v702
        %v704 = vmul.f32 %v699, %v703
        %vm705 = vweird.f32 %v698
        %vm706 = vweird.f32 %v699
        %vm707 = vmor %vm705, %vm706
        %v708 = vsel %vm707, %v699, %v704
        %v709 = vmul.f32 %v692, %v708
        %v711 = vperm.slane %v678, 0
        %v713 = vmul.f32 %v709, %v711
        %v715 = vperm.slane %v679, 0
        %v717 = vadd.f32 %v713, %v715
        %v718 = vpack.c.bf16 %v717, %v717
        %v719 = vld [vmem:[%s633] sm:$0xf]
        %v720 = vld [vmem:[%s633 + $0x4] sm:$0xf]
        %v721 = vld [vmem:[%s633 + $0x8] sm:$0xf]
        %v722 = vld [vmem:[%s633 + $0xc] sm:$0xf]
        %v723 = vld [vmem:[%s636] sm:$0x1]
        %v725 = vperm.slane %v723, 0
        %v731 = vunpack.c.l.b16 %v719
        %v732 = vunpack.c.l.b16 %v720
        %v733 = vunpack.c.l.b16 %v721
        %v734 = vunpack.c.l.b16 %v722
        %v735 = vpack.c.b16 %v732, %v731
        %v736 = vpack.c.b16 %v734, %v733
        %v740 = vsel %vm680, %v718, 0
        %742 = vmatpush.bf16.msra.mxu0 0
        %743 = vmatpush.bf16.msra.mxu0 0
        %744 = vmatpush.bf16.msra.mxu0 0
        %745 = vmatpush.bf16.msra.mxu0 0
        %746 = vmatpush.bf16.msra.mxu0 0
        %747 = vmatpush.bf16.msra.mxu0 0
        %748 = vmatpush.bf16.msra.mxu0 %v736
        %749 = vmatpush.bf16.msra.mxu0 %v735
        %750 = vmatmul.bf16.gmra.mxu0 %v740
        %v751 = vpop.f32.mrf.mxu0
        %v752 = vadd.f32 %v725, %v751
        %v753 = vpop.f32.mrf.mxu0
        %754 = vdwg.mxu0
        %v755 = vlaneseq
        %v756 = vshrl.u32 %v755, 7
        %v757 = vlaneseq
        %v758 = vand.u32 %v757, 127
        %vm759 = vcmp.ge.s32.totalorder %v756, %v758
        %v760 = vpack.c.bf16 %v752, %v752
        %762 = vrot.lane.b32.xlu0 %v760, 96
        %v763 = vpop.permute.xlu0 %762
        %vm764 = vcmask 64512
        %v766 = vsel %vm764, %v760, 0
        %v769 = vsel %vm764, %v763, 0
        %771 = vmatpush.bf16.xpose.msra.mxu0 0
        %772 = vmatpush.bf16.xpose.msra.mxu0 0
        %773 = vmatpush.bf16.xpose.msra.mxu0 0
        %774 = vmatpush.bf16.xpose.msra.mxu0 0
        %775 = vmatpush.bf16.xpose.msra.mxu0 0
        %776 = vmatpush.bf16.xpose.msra.mxu0 0
        %777 = vmatpush.bf16.xpose.msra.mxu0 0
        %778 = vmatpush.bf16.xpose.msra.mxu0 %v769
        %779 = vmatmul.bf16.gmra.mxu0 %v766
        %v780 = vpop.f32.mrf.mxu0
        %v781 = vadd.f32 0.0, %v780
        %v782 = vpop.f32.mrf.mxu0
        %783 = vdwg.mxu0
        %v784 = vmul.f32 %v781, 0.35355338
        %v785 = vsel %vm759, %v784, -1e+30
        %v786 = vsel %vm764, %v785, -inf
        %787 = vmax.xlane.f32.xlu0 %v786
        %v788 = vpop.xlane.xlu0 %787
        %v789 = vsub.f32 %v785, %v788
        %v790 = vmul.f32 %v789, 1.442695
        %v791 = vpow.pop %v790
        %v792 = vsel %vm764, %v791, 0.0
        %793 = vadd.xlane.f32.xlu0 %v792
        %v794 = vpop.xlane.xlu0 %793
        %v795 = vrcp.pop %v794
        %v796 = vmul.f32 %v791, %v795
        %v797 = vpack.c.bf16 %v796, %v796
        %798 = vrot.lane.b32.xlu0 %v760, 64
        %v799 = vpop.permute.xlu0 %798
        %v801 = vsel %vm764, %v797, 0
        %vm803 = vcmask 1043456
        %v805 = vsel %vm803, %v799, 0
        %807 = vmatpush.bf16.msra.mxu0 0
        %808 = vmatpush.bf16.msra.mxu0 0
        %809 = vmatpush.bf16.msra.mxu0 0
        %810 = vmatpush.bf16.msra.mxu0 0
        %811 = vmatpush.bf16.msra.mxu0 0
        %812 = vmatpush.bf16.msra.mxu0 0
        %813 = vmatpush.bf16.msra.mxu0 0
        %814 = vmatpush.bf16.msra.mxu0 %v805
        %815 = vmatmul.bf16.gmra.mxu0 %v801
        %v816 = vpop.f32.mrf.mxu0
        %v817 = vadd.f32 0.0, %v816
        %v818 = vpop.f32.mrf.mxu0
        %819 = vdwg.mxu0
        %820 = vrot.lane.b32.xlu0 %v760, 120
        %v821 = vpop.permute.xlu0 %820
        %822 = vrot.lane.b32.xlu0 %v760, 88
        %v823 = vpop.permute.xlu0 %822
        %v825 = vsel %vm764, %v821, 0
        %v828 = vsel %vm764, %v823, 0
        %830 = vmatpush.bf16.xpose.msra.mxu0 0
        %831 = vmatpush.bf16.xpose.msra.mxu0 0
        %832 = vmatpush.bf16.xpose.msra.mxu0 0
        %833 = vmatpush.bf16.xpose.msra.mxu0 0
        %834 = vmatpush.bf16.xpose.msra.mxu0 0
        %835 = vmatpush.bf16.xpose.msra.mxu0 0
        %836 = vmatpush.bf16.xpose.msra.mxu0 0
        %837 = vmatpush.bf16.xpose.msra.mxu0 %v828
        %838 = vmatmul.bf16.gmra.mxu0 %v825
        %v839 = vpop.f32.mrf.mxu0
        %v840 = vadd.f32 0.0, %v839
        %v841 = vpop.f32.mrf.mxu0
        %842 = vdwg.mxu0
        %v843 = vmul.f32 %v840, 0.35355338
        %v844 = vsel %vm759, %v843, -1e+30
        %v845 = vsel %vm764, %v844, -inf
        %846 = vmax.xlane.f32.xlu0 %v845
        %v847 = vpop.xlane.xlu0 %846
        %v848 = vsub.f32 %v844, %v847
        %v849 = vmul.f32 %v848, 1.442695
        %v850 = vpow.pop %v849
        %v851 = vsel %vm764, %v850, 0.0
        %852 = vadd.xlane.f32.xlu0 %v851
        %v853 = vpop.xlane.xlu0 %852
        %v854 = vrcp.pop %v853
        %v855 = vmul.f32 %v850, %v854
        %v856 = vpack.c.bf16 %v855, %v855
        %857 = vrot.lane.b32.xlu0 %v760, 56
        %v858 = vpop.permute.xlu0 %857
        %v860 = vsel %vm764, %v856, 0
        %v863 = vsel %vm803, %v858, 0
        %865 = vmatpush.bf16.msra.mxu0 0
        %866 = vmatpush.bf16.msra.mxu0 0
        %867 = vmatpush.bf16.msra.mxu0 0
        %868 = vmatpush.bf16.msra.mxu0 0
        %869 = vmatpush.bf16.msra.mxu0 0
        %870 = vmatpush.bf16.msra.mxu0 0
        %871 = vmatpush.bf16.msra.mxu0 0
        %872 = vmatpush.bf16.msra.mxu0 %v863
        %873 = vmatmul.bf16.gmra.mxu0 %v860
        %v874 = vpop.f32.mrf.mxu0
        %v875 = vadd.f32 0.0, %v874
        %v876 = vpop.f32.mrf.mxu0
        %877 = vdwg.mxu0
        %878 = vrot.lane.b32.xlu0 %v760, 112
        %v879 = vpop.permute.xlu0 %878
        %880 = vrot.lane.b32.xlu0 %v760, 80
        %v881 = vpop.permute.xlu0 %880
        %v883 = vsel %vm764, %v879, 0
        %v886 = vsel %vm764, %v881, 0
        %888 = vmatpush.bf16.xpose.msra.mxu0 0
        %889 = vmatpush.bf16.xpose.msra.mxu0 0
        %890 = vmatpush.bf16.xpose.msra.mxu0 0
        %891 = vmatpush.bf16.xpose.msra.mxu0 0
        %892 = vmatpush.bf16.xpose.msra.mxu0 0
        %893 = vmatpush.bf16.xpose.msra.mxu0 0
        %894 = vmatpush.bf16.xpose.msra.mxu0 0
        %895 = vmatpush.bf16.xpose.msra.mxu0 %v886
        %896 = vmatmul.bf16.gmra.mxu0 %v883
        %v897 = vpop.f32.mrf.mxu0
        %v898 = vadd.f32 0.0, %v897
        %v899 = vpop.f32.mrf.mxu0
        %900 = vdwg.mxu0
        %v901 = vmul.f32 %v898, 0.35355338
        %v902 = vsel %vm759, %v901, -1e+30
        %v903 = vsel %vm764, %v902, -inf
        %904 = vmax.xlane.f32.xlu0 %v903
        %v905 = vpop.xlane.xlu0 %904
        %v906 = vsub.f32 %v902, %v905
        %v907 = vmul.f32 %v906, 1.442695
        %v908 = vpow.pop %v907
        %v909 = vsel %vm764, %v908, 0.0
        %910 = vadd.xlane.f32.xlu0 %v909
        %v911 = vpop.xlane.xlu0 %910
        %v912 = vrcp.pop %v911
        %v913 = vmul.f32 %v908, %v912
        %v914 = vpack.c.bf16 %v913, %v913
        %915 = vrot.lane.b32.xlu0 %v760, 48
        %v916 = vpop.permute.xlu0 %915
        %v918 = vsel %vm764, %v914, 0
        %v921 = vsel %vm803, %v916, 0
        %923 = vmatpush.bf16.msra.mxu0 0
        %924 = vmatpush.bf16.msra.mxu0 0
        %925 = vmatpush.bf16.msra.mxu0 0
        %926 = vmatpush.bf16.msra.mxu0 0
        %927 = vmatpush.bf16.msra.mxu0 0
        %928 = vmatpush.bf16.msra.mxu0 0
        %929 = vmatpush.bf16.msra.mxu0 0
        %930 = vmatpush.bf16.msra.mxu0 %v921
        %931 = vmatmul.bf16.gmra.mxu0 %v918
        %v932 = vpop.f32.mrf.mxu0
        %v933 = vadd.f32 0.0, %v932
        %v934 = vpop.f32.mrf.mxu0
        %935 = vdwg.mxu0
        %936 = vrot.lane.b32.xlu0 %v760, 104
        %v937 = vpop.permute.xlu0 %936
        %938 = vrot.lane.b32.xlu0 %v760, 72
        %v939 = vpop.permute.xlu0 %938
        %v941 = vsel %vm764, %v937, 0
        %v944 = vsel %vm764, %v939, 0
        %946 = vmatpush.bf16.xpose.msra.mxu0 0
        %947 = vmatpush.bf16.xpose.msra.mxu0 0
        %948 = vmatpush.bf16.xpose.msra.mxu0 0
        %949 = vmatpush.bf16.xpose.msra.mxu0 0
        %950 = vmatpush.bf16.xpose.msra.mxu0 0
        %951 = vmatpush.bf16.xpose.msra.mxu0 0
        %952 = vmatpush.bf16.xpose.msra.mxu0 0
        %953 = vmatpush.bf16.xpose.msra.mxu0 %v944
        %954 = vmatmul.bf16.gmra.mxu0 %v941
        %v955 = vpop.f32.mrf.mxu0
        %v956 = vadd.f32 0.0, %v955
        %v957 = vpop.f32.mrf.mxu0
        %958 = vdwg.mxu0
        %v959 = vmul.f32 %v956, 0.35355338
        %v960 = vsel %vm759, %v959, -1e+30
        %v961 = vsel %vm764, %v960, -inf
        %962 = vmax.xlane.f32.xlu0 %v961
        %v963 = vpop.xlane.xlu0 %962
        %v964 = vsub.f32 %v960, %v963
        %v965 = vmul.f32 %v964, 1.442695
        %v966 = vpow.pop %v965
        %v967 = vsel %vm764, %v966, 0.0
        %968 = vadd.xlane.f32.xlu0 %v967
        %v969 = vpop.xlane.xlu0 %968
        %v970 = vrcp.pop %v969
        %v971 = vmul.f32 %v966, %v970
        %v972 = vpack.c.bf16 %v971, %v971
        %973 = vrot.lane.b32.xlu0 %v760, 40
        %v974 = vpop.permute.xlu0 %973
        %v976 = vsel %vm764, %v972, 0
        %v979 = vsel %vm803, %v974, 0
        %981 = vmatpush.bf16.msra.mxu0 0
        %982 = vmatpush.bf16.msra.mxu0 0
        %983 = vmatpush.bf16.msra.mxu0 0
        %984 = vmatpush.bf16.msra.mxu0 0
        %985 = vmatpush.bf16.msra.mxu0 0
        %986 = vmatpush.bf16.msra.mxu0 0
        %987 = vmatpush.bf16.msra.mxu0 0
        %988 = vmatpush.bf16.msra.mxu0 %v979
        %989 = vmatmul.bf16.gmra.mxu0 %v976
        %v990 = vpop.f32.mrf.mxu0
        %v991 = vadd.f32 0.0, %v990
        %v992 = vpop.f32.mrf.mxu0
        %993 = vdwg.mxu0
        %995 = vrot.lane.b32.xlu0 %v875, 8
        %v996 = vpop.permute.xlu0 %995
        %999 = vrot.lane.b32.xlu0 %v933, 16
        %v1000 = vpop.permute.xlu0 %999
        %1003 = vrot.lane.b32.xlu0 %v991, 24
        %v1004 = vpop.permute.xlu0 %1003
        %v1006 = vsel %vm764, %v817, %v996
        %vm1007 = vcmask 130048
        %v1008 = vsel %vm1007, %v1006, %v1000
        %vm1009 = vcmask 195584
        %v1010 = vsel %vm1009, %v1008, %v1004
        %v1011 = vpack.c.bf16 %v1010, %v1010
        %v1012 = vld [vmem:[%s641] sm:$0xf]
        %v1013 = vld [vmem:[%s641 + $0x4] sm:$0xf]
        %v1014 = vld [vmem:[%s641 + $0x8] sm:$0xf]
        %v1015 = vld [vmem:[%s641 + $0xc] sm:$0xf]
        %v1020 = vunpack.c.l.b16 %v1012
        %v1021 = vunpack.c.l.b16 %v1013
        %v1022 = vunpack.c.l.b16 %v1014
        %v1023 = vunpack.c.l.b16 %v1015
        %v1024 = vpack.c.b16 %v1021, %v1020
        %v1025 = vpack.c.b16 %v1023, %v1022
        %v1029 = vsel %vm680, %v1011, 0
        %1031 = vmatpush.bf16.msra.mxu0 0
        %1032 = vmatpush.bf16.msra.mxu0 0
        %1033 = vmatpush.bf16.msra.mxu0 0
        %1034 = vmatpush.bf16.msra.mxu0 0
        %1035 = vmatpush.bf16.msra.mxu0 0
        %1036 = vmatpush.bf16.msra.mxu0 0
        %1037 = vmatpush.bf16.msra.mxu0 %v1025
        %1038 = vmatpush.bf16.msra.mxu0 %v1024
        %1039 = vmatmul.bf16.gmra.mxu0 %v1029
        %v1040 = vpop.f32.mrf.mxu0
        %v1041 = vadd.f32 0.0, %v1040
        %v1042 = vpop.f32.mrf.mxu0
        %1043 = vdwg.mxu0
        %v1044 = vadd.f32 %v677, %v1041
        %v1045 = vld [vmem:[%s644] sm:$0x1]
        %v1047 = vperm.slane %v1045, 0
        %v1049 = vadd.f32 %v1044, %v1047
        %v1050 = vld [vmem:[%s647] sm:$0x1]
        %v1051 = vld [vmem:[%s650] sm:$0x1]
        %v1052 = vsel %vm680, %v1049, 0.0
        %1053 = vadd.xlane.f32.xlu0 %v1052
        %v1054 = vpop.xlane.xlu0 %1053
        %v1055 = vmul.f32 %v1054, %v690
        %v1056 = vsub.f32 %v1049, %v1055
        %v1057 = vmul.f32 %v1056, %v1056
        %v1058 = vsel %vm680, %v1057, 0.0
        %1059 = vadd.xlane.f32.xlu0 %v1058
        %v1060 = vpop.xlane.xlu0 %1059
        %v1061 = vmul.f32 %v1060, %v690
        %v1062 = vadd.f32 %v1061, 1e-05
        %v1063 = vrsqrt.pop %v1062
        %v1064 = vmul.f32 %v1063, %v1062
        %v1065 = vmul.f32 %v1064, %v1063
        %v1066 = vmul.f32 0.5, %v1065
        %v1067 = vsub.f32 1.5, %v1066
        %v1068 = vmul.f32 %v1063, %v1067
        %vm1069 = vweird.f32 %v1062
        %vm1070 = vweird.f32 %v1063
        %vm1071 = vmor %vm1069, %vm1070
        %v1072 = vsel %vm1071, %v1063, %v1068
        %v1073 = vmul.f32 %v1056, %v1072
        %v1075 = vperm.slane %v1050, 0
        %v1077 = vmul.f32 %v1073, %v1075
        %v1079 = vperm.slane %v1051, 0
        %v1081 = vadd.f32 %v1077, %v1079
        %v1082 = vpack.c.bf16 %v1081, %v1081
        %v1083 = vld [vmem:[%s655] sm:$0xf]
        %v1084 = vld [vmem:[%s655 + $0x4] sm:$0xf]
        %v1085 = vld [vmem:[%s655 + $0x8] sm:$0xf]
        %v1086 = vld [vmem:[%s655 + $0xc] sm:$0xf]
        %v1087 = vld [vmem:[%s658] sm:$0x1]
        %v1089 = vperm.slane %v1087, 0
        %v1095 = vunpack.c.l.b16 %v1083
        %v1096 = vunpack.c.l.b16 %v1084
        %v1097 = vunpack.c.l.b16 %v1085
        %v1098 = vunpack.c.l.b16 %v1086
        %v1099 = vpack.c.b16 %v1096, %v1095
        %v1100 = vpack.c.b16 %v1098, %v1097
        %v1104 = vsel %vm680, %v1082, 0
        %1106 = vmatpush.bf16.msra.mxu0 0
        %1107 = vmatpush.bf16.msra.mxu0 0
        %1108 = vmatpush.bf16.msra.mxu0 0
        %1109 = vmatpush.bf16.msra.mxu0 0
        %1110 = vmatpush.bf16.msra.mxu0 0
        %1111 = vmatpush.bf16.msra.mxu0 0
        %1112 = vmatpush.bf16.msra.mxu0 %v1100
        %1113 = vmatpush.bf16.msra.mxu0 %v1099
        %1114 = vmatmul.bf16.gmra.mxu0 %v1104
        %v1115 = vpop.f32.mrf.mxu0
        %v1116 = vadd.f32 %v1089, %v1115
        %v1117 = vpop.f32.mrf.mxu0
        %1118 = vdwg.mxu0
        %v1119 = vmul.f32 %v1116, %v1116
        %v1120 = vmul.f32 %v1116, %v1119
        %v1121 = vmul.f32 %v1120, 0.044715
        %v1122 = vadd.f32 %v1116, %v1121
        %v1123 = vmul.f32 %v1122, 0.7978846
        %v1124 = vtanh.pop %v1123
        %v1125 = vadd.f32 %v1124, 1.0
        %v1126 = vmul.f32 %v1125, 0.5
        %v1127 = vmul.f32 %v1116, %v1126
        %v1128 = vpack.c.bf16 %v1127, %v1127
        %v1129 = vld [vmem:[%s663] sm:$0xf]
        %v1130 = vld [vmem:[%s663 + $0x4] sm:$0xf]
        %v1131 = vld [vmem:[%s663 + $0x8] sm:$0xf]
        %v1132 = vld [vmem:[%s663 + $0xc] sm:$0xf]
        %v1133 = vld [vmem:[%s663 + $0x10] sm:$0xf]
        %v1134 = vld [vmem:[%s663 + $0x14] sm:$0xf]
        %v1135 = vld [vmem:[%s663 + $0x18] sm:$0xf]
        %v1136 = vld [vmem:[%s663 + $0x1c] sm:$0xf]
        %v1137 = vld [vmem:[%s663 + $0x20] sm:$0xf]
        %v1138 = vld [vmem:[%s663 + $0x24] sm:$0xf]
        %v1139 = vld [vmem:[%s663 + $0x28] sm:$0xf]
        %v1140 = vld [vmem:[%s663 + $0x2c] sm:$0xf]
        %v1141 = vld [vmem:[%s663 + $0x30] sm:$0xf]
        %v1142 = vld [vmem:[%s663 + $0x34] sm:$0xf]
        %v1143 = vld [vmem:[%s663 + $0x38] sm:$0xf]
        %v1144 = vld [vmem:[%s663 + $0x3c] sm:$0xf]
        %v1161 = vunpack.c.l.b16 %v1129
        %v1162 = vunpack.c.l.b16 %v1130
        %v1163 = vunpack.c.l.b16 %v1131
        %v1164 = vunpack.c.l.b16 %v1132
        %v1165 = vunpack.c.l.b16 %v1133
        %v1166 = vunpack.c.l.b16 %v1134
        %v1167 = vunpack.c.l.b16 %v1135
        %v1168 = vunpack.c.l.b16 %v1136
        %v1169 = vunpack.c.l.b16 %v1137
        %v1170 = vunpack.c.l.b16 %v1138
        %v1171 = vunpack.c.l.b16 %v1139
        %v1172 = vunpack.c.l.b16 %v1140
        %v1173 = vunpack.c.l.b16 %v1141
        %v1174 = vunpack.c.l.b16 %v1142
        %v1175 = vunpack.c.l.b16 %v1143
        %v1176 = vunpack.c.l.b16 %v1144
        %v1177 = vpack.c.b16 %v1162, %v1161
        %v1178 = vpack.c.b16 %v1164, %v1163
        %v1179 = vpack.c.b16 %v1166, %v1165
        %v1180 = vpack.c.b16 %v1168, %v1167
        %v1181 = vpack.c.b16 %v1170, %v1169
        %v1182 = vpack.c.b16 %v1172, %v1171
        %v1183 = vpack.c.b16 %v1174, %v1173
        %v1184 = vpack.c.b16 %v1176, %v1175
        %1193 = vmatpush.bf16.msra.mxu0 %v1184
        %1194 = vmatpush.bf16.msra.mxu0 %v1183
        %1195 = vmatpush.bf16.msra.mxu0 %v1182
        %1196 = vmatpush.bf16.msra.mxu0 %v1181
        %1197 = vmatpush.bf16.msra.mxu0 %v1180
        %1198 = vmatpush.bf16.msra.mxu0 %v1179
        %1199 = vmatpush.bf16.msra.mxu0 %v1178
        %1200 = vmatpush.bf16.msra.mxu0 %v1177
        %1201 = vmatmul.bf16.gmra.mxu0 %v1128
        %v1202 = vpop.f32.mrf.mxu0
        %v1203 = vadd.f32 0.0, %v1202
        %v1204 = vpop.f32.mrf.mxu0
        %1205 = vdwg.mxu0
        %v1206 = vadd.f32 %v1049, %v1203
        %v1207 = vld [vmem:[%s666] sm:$0x1]
        %v1209 = vperm.slane %v1207, 0
        %v1211 = vadd.f32 %v1206, %v1209
        %1212 = vst.msk [vmem:[#allocation2] sm:$0xff] %vm680, %v1211
        %p1213 = scmp.eq.s32.totalorder %s33, 1
        // Predicated region
        $region81: #{tpu_custom_call.1} parent=75 // pred_check
          %p1214 = pneg %p1213
        $region82: #{tpu_custom_call.1} parent=75 // pred_check_branch
          %1216 = sbr.rel (%p1214) target = $region84
        $region83: #{tpu_custom_call.1} parent=75 // pred_region
          %v1217 = vld [vmem:[#allocation2] sm:$0xff]
          %1218 = vst.msk [vmem:[%s618] sm:$0xff] %vm680, %v1217
        $region84: #{tpu_custom_call.1} parent=75 // pred_fallthru
          _
        %s1219 = sand.u32 %s407, 1
        %s1220 = scalar_lea.sflag [#allocation4], %s1219
        %s1221 = sand.u32 %s407, 1
        %s1222 = smul.addr %s1221, 8
        %s1223 = scalar_lea.vmem [#allocation3], %s1222
        // Predicated region
        $region85: #{tpu_custom_call.1} parent=75 // pred_check
          %p1224 = pneg %p417
        $region86: #{tpu_custom_call.1} parent=75 // pred_check_branch
          %1226 = sbr.rel (%p1224) target = $region88
        $region87: #{tpu_custom_call.1} parent=75 // pred_region
          %1228 = vsyncadd %s1220, 0
          %s1229 = smul.addr %s32, 8
          %s1230 = scalar_lea.hbm %s14, %s1229
          %s1232 = sshll.u32 %s1223, 4
          %s1233 = int_to_ptr.vmem [resolvable:$true] %s1232
          %s1234 = sshll.u32 %s1230, 4
          %s1235 = int_to_ptr.hbm [resolvable:$true] %s1234
          %1237 = dma.vmem_to_hbm [thread:$0]  %s1233, 128, %s1235, %s1220
        $region88: #{tpu_custom_call.1} parent=75 // pred_fallthru
          _
      $region76: #{tpu_custom_call.1} parent=5 // pred_fallthru
        _
      %p1238 = scmp.le.s32.totalorder 2, %s23
      // Predicated region
      $region89: #{tpu_custom_call.1} parent=5 // pred_check
        %p1239 = pneg %p1238
      $region90: #{tpu_custom_call.1} parent=5 // pred_check_branch
        %1241 = sbr.rel (%p1239) target = $region92
      $region91: #{tpu_custom_call.1} parent=5 // pred_region
        %s1242 = ssub.s32 %s23, 2
        // Predicated region
        $region93: #{tpu_custom_call.1} parent=91 // pred_check
          %p1243 = pneg %p423
        $region94: #{tpu_custom_call.1} parent=91 // pred_check_branch
          %1245 = sbr.rel (%p1243) target = $region96
        $region95: #{tpu_custom_call.1} parent=91 // pred_region
          %s1246 = sand.u32 %s408, 1
          %s1247 = scalar_lea.sflag [#allocation4], %s1246
          %s1248 = sand.u32 %s408, 1
          %s1249 = smul.addr %s1248, 8
          %s1250 = scalar_lea.vmem [#allocation3], %s1249
          %1252 = dma.done %s1247, 128
        $region96: #{tpu_custom_call.1} parent=91 // pred_fallthru
          _
      $region92: #{tpu_custom_call.1} parent=5 // pred_fallthru
        _
    $region6: #{tpu_custom_call.1} parent=1 // loop_footer
      %s27 = sadd.s32 1, %s23
    $region7: #{tpu_custom_call.1} parent=1 // loop_footer_branch
      %22 = sbr.rel target = $region3
    $region8: #{tpu_custom_call.1} parent=1 // loop_exit
      _
    %1253 = vsyncpa [#allocation4], 1
    %s1254 = scalar_lea.sflag [#allocation4], 1
    %1255 = vsyncpa %s1254, 1

</llo_original>
